<compile_context>
chip_gen: v7x
topology: tpu7x:2x2x1
jax: 0.10.0
libtpu: 0.0.40
codegen_flags: <defaults>
</compile_context>

<pallas_src>
import functools

import jax
import jax.numpy as jnp
from jax.experimental import pallas as pl
from jax.experimental.pallas import tpu as pltpu


def _leaky_relu(x, slope=0.2):
    # For slope in (0, 1), max(x, slope*x) == leaky_relu(x, slope); 2 VALU ops vs 3.
    return jnp.maximum(x, slope * x)


def _round_up(x, m):
    return ((x + m - 1) // m) * m


def generator_kernel(x_ref,
                     w1_ref, b1_ref,
                     w2_ref, b2_ref,
                     w3_ref, b3_ref,
                     w4_ref, b4_ref,
                     o_ref):
    """All four matmuls + activations fused over one (features, batch_tile) tile."""
    mm_dtype = w1_ref.dtype  # matmul operand dtype (f32 default; astype is a no-op then)

    # (in_dim, T) activation tile; batch is on lanes.
    h = x_ref[...].astype(mm_dtype)

    # Layer 1: (hidden, in) @ (in, T) -> (hidden, T), f32 accumulate, f32 epilogue.
    h = jnp.dot(w1_ref[...], h, preferred_element_type=jnp.float32) + b1_ref[...]
    h = _leaky_relu(h)
    # TODO(synk): nn.Dropout(0.3) is identity at inference; training-mode dropout omitted.

    h = jnp.dot(w2_ref[...], h.astype(mm_dtype),
                preferred_element_type=jnp.float32) + b2_ref[...]
    h = _leaky_relu(h)

    h = jnp.dot(w3_ref[...], h.astype(mm_dtype),
                preferred_element_type=jnp.float32) + b3_ref[...]
    h = _leaky_relu(h)

    h = jnp.dot(w4_ref[...], h.astype(mm_dtype),
                preferred_element_type=jnp.float32) + b4_ref[...]
    o_ref[...] = jnp.tanh(h).astype(o_ref.dtype)   # lane-dense (out_dim, T) store


def _pick_batch_tile(B, requested):
    """Clamp the batch tile: multiple of 256, no bigger than the (rounded) batch, and
    small enough to give >= 4 grid steps once the batch is large enough to afford it
    (2 steps per TensorCore on v7x keeps both cores busy with pipeline overlap)."""
    tile = max(256, min(_round_up(int(requested), 256), _round_up(B, 256)))
    if B >= 4 * 256:
        cap = max(256, (B // 4) // 256 * 256)   # largest multiple of 256 <= B/4
        tile = min(tile, cap)
    return tile


def generator_forward_t(x_t, params, *, batch_tile=1024, matmul_dtype=None,
                        out_dtype=None):
    """Lane-dense-native entry point (no wrapper transposes).

    x_t: (input_size, B)  — batch on the lane axis.
    Returns (output_size, B).
    """
    in_dim, B = x_t.shape
    w1, b1 = params["w1"], params["b1"]
    w2, b2 = params["w2"], params["b2"]
    w3, b3 = params["w3"], params["b3"]
    w4, b4 = params["w4"], params["b4"]
    out_dim = w4.shape[0]
    out_dtype = x_t.dtype if out_dtype is None else out_dtype

    if matmul_dtype is not None:
        w1, w2, w3, w4 = (w.astype(matmul_dtype) for w in (w1, w2, w3, w4))
    # Biases stay f32 (added to the f32 accumulator).
    b1, b2, b3, b4 = (b.astype(jnp.float32) for b in (b1, b2, b3, b4))

    batch_tile = _pick_batch_tile(B, batch_tile)
    assert batch_tile % 128 == 0
    B_pad = _round_up(B, batch_tile)
    if B_pad != B:
        x_t = jnp.pad(x_t, ((0, 0), (0, B_pad - B)))   # pad cols sliced off below
    grid = (B_pad // batch_tile,)

    # Weights/biases are tiny (~50-100 KB total): every grid step sees the full tensor.
    def full(shape):
        return pl.BlockSpec(shape, lambda i: (0,) * len(shape))

    dims = [(w1.shape[1], w1.shape[0]), (w2.shape[1], w2.shape[0]),
            (w3.shape[1], w3.shape[0]), (w4.shape[1], w4.shape[0])]
    weight_bytes = sum(int(t.size) * t.dtype.itemsize
                       for t in (w1, b1, w2, b2, w3, b3, w4, b4))
    flops = 2 * B_pad * sum(fi * fo for fi, fo in dims)
    bytes_accessed = (B_pad * in_dim * x_t.dtype.itemsize
                      + B_pad * out_dim * jnp.dtype(out_dtype).itemsize
                      + weight_bytes)
    cost = pl.CostEstimate(flops=int(flops),
                           transcendentals=int(B_pad * out_dim),
                           bytes_accessed=int(bytes_accessed))

    # Rough VMEM budget: double-buffered in/out tiles + live f32 intermediates
    # (+ bf16 copies if casting) + double-buffered weights. Only raise the scoped
    # limit when we'd exceed the smallest default (v5e: 16 MiB), with headroom.
    mm_itemsize = 4 if matmul_dtype is None else jnp.dtype(matmul_dtype).itemsize
    max_feat = max(in_dim, w1.shape[0], w2.shape[0], w3.shape[0], out_dim)
    vmem_est = (2 * 2 * (in_dim + out_dim) * batch_tile * 4
                + 4 * max_feat * batch_tile * (4 + mm_itemsize)
                + 2 * weight_bytes)
    cp_kwargs = dict(dimension_semantics=("parallel",))   # batch tiles shard across TCs
    if vmem_est > 12 * (1 << 20):
        cp_kwargs["vmem_limit_bytes"] = int(min(2 * vmem_est, 48 * (1 << 20)))

    out_t = pl.pallas_call(
        generator_kernel,
        out_shape=jax.ShapeDtypeStruct((out_dim, B_pad), out_dtype),
        grid_spec=pltpu.PrefetchScalarGridSpec(
            num_scalar_prefetch=0,
            grid=grid,
            in_specs=[
                pl.BlockSpec((in_dim, batch_tile), lambda i: (0, i)),
                full(w1.shape), full(b1.shape),
                full(w2.shape), full(b2.shape),
                full(w3.shape), full(b3.shape),
                full(w4.shape), full(b4.shape),
            ],
            out_specs=pl.BlockSpec((out_dim, batch_tile), lambda i: (0, i)),
        ),
        compiler_params=pltpu.CompilerParams(**cp_kwargs),
        cost_estimate=cost,
    )(x_t, w1, b1, w2, b2, w3, b3, w4, b4)

    if B_pad != B:
        out_t = out_t[:, :B]
    return out_t                                           # (out_dim, B)


def generator_forward(x, params, *, batch_tile=1024, matmul_dtype=None, out_dtype=None):
    """PyTorch-contract wrapper: x (B, input_size) -> (B, output_size).
    For transpose-free use, call generator_forward_t with (features, batch) directly;
    under jit these .T ops fuse with the producing/consuming XLA ops."""
    out_t = generator_forward_t(x.T, params, batch_tile=batch_tile,
                                matmul_dtype=matmul_dtype, out_dtype=out_dtype)
    return out_t.T


def init_params(key, input_size, hidden_dim, output_size):
    """PyTorch-Linear-style uniform(-1/sqrt(fan_in), +1/sqrt(fan_in)).
    Weights stored PyTorch-native (out_features, in_features); biases (out_features, 1)."""
    dims = [
        (input_size, hidden_dim),
        (hidden_dim, hidden_dim * 2),
        (hidden_dim * 2, hidden_dim * 4),
        (hidden_dim * 4, output_size),
    ]
    params = {}
    for idx, (fan_in, fan_out) in enumerate(dims, start=1):
        key, kw, kb = jax.random.split(key, 3)
        bound = 1.0 / jnp.sqrt(fan_in)
        params[f"w{idx}"] = jax.random.uniform(
            kw, (fan_out, fan_in), jnp.float32, -bound, bound)
        params[f"b{idx}"] = jax.random.uniform(
            kb, (fan_out, 1), jnp.float32, -bound, bound)
    return params


def generator_reference(x, params):
    def lin(h, w, b):
        return h @ w.T + b[:, 0]
    h = _leaky_relu(lin(x, params["w1"], params["b1"]))
    h = _leaky_relu(lin(h, params["w2"], params["b2"]))
    h = _leaky_relu(lin(h, params["w3"], params["b3"]))
    return jnp.tanh(lin(h, params["w4"], params["b4"]))


if __name__ == "__main__":
    # Generator(input_size=16, hidden_dim=32, output_size=16).
    input_size, hidden_dim, output_size = 16, 32, 16

    key = jax.random.PRNGKey(0)
    key, kp = jax.random.split(key)
    params = init_params(kp, input_size, hidden_dim, output_size)

    # --- Test 1: PyTorch-contract API, ragged small batch (tile clamp path, grid=1) ---
    key, kx = jax.random.split(key)
    x_small = jax.random.normal(kx, (500, input_size), jnp.float32)
    ref_small = generator_reference(x_small, params)
    fwd = jax.jit(generator_forward)
    out_small = jax.block_until_ready(fwd(x_small, params))
    assert out_small.shape == (500, output_size)
    assert jnp.allclose(out_small, ref_small, atol=1e-5, rtol=1e-5), "f32 small-batch mismatch"

    # --- Test 2: lane-dense (features, batch) API, multi-step grid (>= 4 steps) ---
    key, kx2 = jax.random.split(key)
    x_big = jax.random.normal(kx2, (1536, input_size), jnp.float32)
    ref_big = generator_reference(x_big, params)
    fwd_t = jax.jit(generator_forward_t)
    out_big_t = jax.block_until_ready(fwd_t(x_big.T, params))
    assert out_big_t.shape == (output_size, 1536)
    assert jnp.allclose(out_big_t.T, ref_big, atol=1e-5, rtol=1e-5), "f32 big-batch mismatch"

    # --- Test 3: optional bf16 matmul operands (f32 accumulate + f32 epilogue) ---
    fwd_bf16 = jax.jit(functools.partial(generator_forward, matmul_dtype=jnp.bfloat16))
    out_bf16 = jax.block_until_ready(fwd_bf16(x_small, params))
    assert out_bf16.shape == (500, output_size)
    assert jnp.allclose(out_bf16, ref_small, atol=2e-2, rtol=2e-2), "bf16 mismatch"

    print("KERNEL_OK")
</pallas_src>

<mosaic_0001>
module attributes {stable_mosaic.version = 11 : i64} {
  func.func @generator_kernel(%arg0: i32, %arg1: memref<16x512xf32, #tpu.memory_space<vmem>>, %arg2: memref<32x16xf32, #tpu.memory_space<vmem>>, %arg3: memref<32x1xf32, #tpu.memory_space<vmem>>, %arg4: memref<64x32xf32, #tpu.memory_space<vmem>>, %arg5: memref<64x1xf32, #tpu.memory_space<vmem>>, %arg6: memref<128x64xf32, #tpu.memory_space<vmem>>, %arg7: memref<128x1xf32, #tpu.memory_space<vmem>>, %arg8: memref<16x128xf32, #tpu.memory_space<vmem>>, %arg9: memref<16x1xf32, #tpu.memory_space<vmem>>, %arg10: memref<16x512xf32, #tpu.memory_space<vmem>>) attributes {dimension_semantics = [#tpu.dimension_semantics<parallel>], iteration_bounds = array<i64: 1>, scalar_prefetch = 0 : i64, scratch_operands = 0 : i64, tpu.core_type = #tpu.core_type<tc>, window_params = [{transform_indices = @transform_0, window_bounds = array<i64: 16, 512>}, {pipeline_mode = #tpu.pipeline_mode<synchronous>, transform_indices = @transform_1, window_bounds = array<i64: 32, 16>}, {pipeline_mode = #tpu.pipeline_mode<synchronous>, transform_indices = @transform_2, window_bounds = array<i64: 32, 1>}, {pipeline_mode = #tpu.pipeline_mode<synchronous>, transform_indices = @transform_3, window_bounds = array<i64: 64, 32>}, {pipeline_mode = #tpu.pipeline_mode<synchronous>, transform_indices = @transform_4, window_bounds = array<i64: 64, 1>}, {pipeline_mode = #tpu.pipeline_mode<synchronous>, transform_indices = @transform_5, window_bounds = array<i64: 128, 64>}, {pipeline_mode = #tpu.pipeline_mode<synchronous>, transform_indices = @transform_6, window_bounds = array<i64: 128, 1>}, {pipeline_mode = #tpu.pipeline_mode<synchronous>, transform_indices = @transform_7, window_bounds = array<i64: 16, 128>}, {pipeline_mode = #tpu.pipeline_mode<synchronous>, transform_indices = @transform_8, window_bounds = array<i64: 16, 1>}, {transform_indices = @transform_9, window_bounds = array<i64: 16, 512>}]} {
    %c0 = arith.constant 0 : index
    %c0_0 = arith.constant 0 : index
    %0 = vector.load %arg1[%c0, %c0_0] : memref<16x512xf32, #tpu.memory_space<vmem>>, vector<16x512xf32>
    %c0_1 = arith.constant 0 : index
    %c0_2 = arith.constant 0 : index
    %1 = vector.load %arg2[%c0_1, %c0_2] : memref<32x16xf32, #tpu.memory_space<vmem>>, vector<32x16xf32>
    %cst = arith.constant dense<0.000000e+00> : vector<32x512xf32>
    %2 = tpu.matmul %1, %0, %cst {dimension_numbers = #tpu.dot_dimension_numbers<[1], [0], [0], [1], [0, 0, 1, 1], [], []>} : vector<32x16xf32>, vector<16x512xf32>, vector<32x512xf32> -> vector<32x512xf32>
    %c0_3 = arith.constant 0 : index
    %c0_4 = arith.constant 0 : index
    %3 = vector.load %arg3[%c0_3, %c0_4] : memref<32x1xf32, #tpu.memory_space<vmem>>, vector<32x1xf32>
    %4 = vector.broadcast %3 : vector<32x1xf32> to vector<32x512xf32>
    %5 = arith.addf %2, %4 : vector<32x512xf32>
    %cst_5 = arith.constant 2.000000e-01 : f32
    %6 = vector.broadcast %cst_5 : f32 to vector<32x512xf32>
    %7 = arith.mulf %6, %5 : vector<32x512xf32>
    %8 = arith.maximumf %5, %7 : vector<32x512xf32>
    %c0_6 = arith.constant 0 : index
    %c0_7 = arith.constant 0 : index
    %9 = vector.load %arg4[%c0_6, %c0_7] : memref<64x32xf32, #tpu.memory_space<vmem>>, vector<64x32xf32>
    %cst_8 = arith.constant dense<0.000000e+00> : vector<64x512xf32>
    %10 = tpu.matmul %9, %8, %cst_8 {dimension_numbers = #tpu.dot_dimension_numbers<[1], [0], [0], [1], [0, 0, 1, 1], [], []>} : vector<64x32xf32>, vector<32x512xf32>, vector<64x512xf32> -> vector<64x512xf32>
    %c0_9 = arith.constant 0 : index
    %c0_10 = arith.constant 0 : index
    %11 = vector.load %arg5[%c0_9, %c0_10] : memref<64x1xf32, #tpu.memory_space<vmem>>, vector<64x1xf32>
    %12 = vector.broadcast %11 : vector<64x1xf32> to vector<64x512xf32>
    %13 = arith.addf %10, %12 : vector<64x512xf32>
    %cst_11 = arith.constant 2.000000e-01 : f32
    %14 = vector.broadcast %cst_11 : f32 to vector<64x512xf32>
    %15 = arith.mulf %14, %13 : vector<64x512xf32>
    %16 = arith.maximumf %13, %15 : vector<64x512xf32>
    %c0_12 = arith.constant 0 : index
    %c0_13 = arith.constant 0 : index
    %17 = vector.load %arg6[%c0_12, %c0_13] : memref<128x64xf32, #tpu.memory_space<vmem>>, vector<128x64xf32>
    %cst_14 = arith.constant dense<0.000000e+00> : vector<128x512xf32>
    %18 = tpu.matmul %17, %16, %cst_14 {dimension_numbers = #tpu.dot_dimension_numbers<[1], [0], [0], [1], [0, 0, 1, 1], [], []>} : vector<128x64xf32>, vector<64x512xf32>, vector<128x512xf32> -> vector<128x512xf32>
    %c0_15 = arith.constant 0 : index
    %c0_16 = arith.constant 0 : index
    %19 = vector.load %arg7[%c0_15, %c0_16] : memref<128x1xf32, #tpu.memory_space<vmem>>, vector<128x1xf32>
    %20 = vector.broadcast %19 : vector<128x1xf32> to vector<128x512xf32>
    %21 = arith.addf %18, %20 : vector<128x512xf32>
    %cst_17 = arith.constant 2.000000e-01 : f32
    %22 = vector.broadcast %cst_17 : f32 to vector<128x512xf32>
    %23 = arith.mulf %22, %21 : vector<128x512xf32>
    %24 = arith.maximumf %21, %23 : vector<128x512xf32>
    %c0_18 = arith.constant 0 : index
    %c0_19 = arith.constant 0 : index
    %25 = vector.load %arg8[%c0_18, %c0_19] : memref<16x128xf32, #tpu.memory_space<vmem>>, vector<16x128xf32>
    %cst_20 = arith.constant dense<0.000000e+00> : vector<16x512xf32>
    %26 = tpu.matmul %25, %24, %cst_20 {dimension_numbers = #tpu.dot_dimension_numbers<[1], [0], [0], [1], [0, 0, 1, 1], [], []>} : vector<16x128xf32>, vector<128x512xf32>, vector<16x512xf32> -> vector<16x512xf32>
    %c0_21 = arith.constant 0 : index
    %c0_22 = arith.constant 0 : index
    %27 = vector.load %arg9[%c0_21, %c0_22] : memref<16x1xf32, #tpu.memory_space<vmem>>, vector<16x1xf32>
    %28 = vector.broadcast %27 : vector<16x1xf32> to vector<16x512xf32>
    %29 = arith.addf %26, %28 : vector<16x512xf32>
    %30 = math.tanh %29 : vector<16x512xf32>
    %c0_23 = arith.constant 0 : index
    %c0_24 = arith.constant 0 : index
    %31 = vector.load %arg10[%c0_23, %c0_24] : memref<16x512xf32, #tpu.memory_space<vmem>>, vector<16x512xf32>
    tpu.vector_store %arg10[%c0_23, %c0_24], %30 {strides = array<i32>} : memref<16x512xf32, #tpu.memory_space<vmem>>, vector<16x512xf32>,
    return
  }
  func.func @transform_0(%arg0: i32) -> (i32, i32) {
    %c0_i32 = arith.constant 0 : i32
    %c0_i32_0 = arith.constant 0 : i32
    return %c0_i32, %arg0 : i32, i32
  }
  func.func @transform_1(%arg0: i32) -> (i32, i32) {
    %c0_i32 = arith.constant 0 : i32
    %c0_i32_0 = arith.constant 0 : i32
    %c0_i32_1 = arith.constant 0 : i32
    return %c0_i32, %c0_i32_0 : i32, i32
  }
  func.func @transform_2(%arg0: i32) -> (i32, i32) {
    %c0_i32 = arith.constant 0 : i32
    %c0_i32_0 = arith.constant 0 : i32
    %c0_i32_1 = arith.constant 0 : i32
    return %c0_i32, %c0_i32_0 : i32, i32
  }
  func.func @transform_3(%arg0: i32) -> (i32, i32) {
    %c0_i32 = arith.constant 0 : i32
    %c0_i32_0 = arith.constant 0 : i32
    %c0_i32_1 = arith.constant 0 : i32
    return %c0_i32, %c0_i32_0 : i32, i32
  }
  func.func @transform_4(%arg0: i32) -> (i32, i32) {
    %c0_i32 = arith.constant 0 : i32
    %c0_i32_0 = arith.constant 0 : i32
    %c0_i32_1 = arith.constant 0 : i32
    return %c0_i32, %c0_i32_0 : i32, i32
  }
  func.func @transform_5(%arg0: i32) -> (i32, i32) {
    %c0_i32 = arith.constant 0 : i32
    %c0_i32_0 = arith.constant 0 : i32
    %c0_i32_1 = arith.constant 0 : i32
    return %c0_i32, %c0_i32_0 : i32, i32
  }
  func.func @transform_6(%arg0: i32) -> (i32, i32) {
    %c0_i32 = arith.constant 0 : i32
    %c0_i32_0 = arith.constant 0 : i32
    %c0_i32_1 = arith.constant 0 : i32
    return %c0_i32, %c0_i32_0 : i32, i32
  }
  func.func @transform_7(%arg0: i32) -> (i32, i32) {
    %c0_i32 = arith.constant 0 : i32
    %c0_i32_0 = arith.constant 0 : i32
    %c0_i32_1 = arith.constant 0 : i32
    return %c0_i32, %c0_i32_0 : i32, i32
  }
  func.func @transform_8(%arg0: i32) -> (i32, i32) {
    %c0_i32 = arith.constant 0 : i32
    %c0_i32_0 = arith.constant 0 : i32
    %c0_i32_1 = arith.constant 0 : i32
    return %c0_i32, %c0_i32_0 : i32, i32
  }
  func.func @transform_9(%arg0: i32) -> (i32, i32) {
    %c0_i32 = arith.constant 0 : i32
    %c0_i32_0 = arith.constant 0 : i32
    return %c0_i32, %arg0 : i32, i32
  }
}

</mosaic_0001>

<llo_original>
// kernel: generator_forward.1
$region0: #{generator_forward.1}
  #allocation0 [shape = 'u32[]', space=smem, size = 0x4, offset = 0x4, fixed_abs, tag = 'smem constant byte address 0x4 - core index']
  #allocation1 [shape = 'u32[144,128]{1,0:T(1,128)}', space=vmem, size = 0x12000, scoped, tag = 'internal scratch']
  %s0 = inlined_call_operand.vmem [shape: f32[16,512], index: 0, kind: input, shape index: {}]
  %s1 = inlined_call_operand.vmem [shape: f32[32,16], index: 1, kind: input, shape index: {}]
  %s2 = inlined_call_operand.vmem [shape: f32[32,1], index: 2, kind: input, shape index: {}]
  %s3 = inlined_call_operand.vmem [shape: f32[64,32], index: 3, kind: input, shape index: {}]
  %s4 = inlined_call_operand.vmem [shape: f32[64,1], index: 4, kind: input, shape index: {}]
  %s5 = inlined_call_operand.vmem [shape: f32[128,64], index: 5, kind: input, shape index: {}]
  %s6 = inlined_call_operand.vmem [shape: f32[128,1], index: 6, kind: input, shape index: {}]
  %s7 = inlined_call_operand.vmem [shape: f32[16,128], index: 7, kind: input, shape index: {}]
  %s8 = inlined_call_operand.vmem [shape: f32[16,1], index: 8, kind: input, shape index: {}]
  %s9 = inlined_call_operand.vmem [shape: f32[16,512], index: 9, kind: output, shape index: {}]
  %s10 = sld [smem:[#allocation0]]
  $region46: #{generator_forward.1} parent=0
    _
  %s12 = ssub.s32 1, %s10
  %s13 = scalar_select 0, %s12, %s10
  // Predicated region
  $region2: #{generator_forward.1} parent=0 // pred_check
    _
  $region3: #{generator_forward.1} parent=0 // pred_check_branch
    %15 = sbr.rel (0) target = $region5
  $region4: #{generator_forward.1} parent=0 // pred_region
    _
  $region5: #{generator_forward.1} parent=0 // pred_fallthru
    _
  // Predicated region
  $region6: #{generator_forward.1} parent=0 // pred_check
    _
  $region7: #{generator_forward.1} parent=0 // pred_check_branch
    %17 = sbr.rel (0) target = $region9
  $region8: #{generator_forward.1} parent=0 // pred_region
    _
  $region9: #{generator_forward.1} parent=0 // pred_fallthru
    _
  // Predicated region
  $region10: #{generator_forward.1} parent=0 // pred_check
    _
  $region11: #{generator_forward.1} parent=0 // pred_check_branch
    %19 = sbr.rel (0) target = $region13
  $region12: #{generator_forward.1} parent=0 // pred_region
    _
  $region13: #{generator_forward.1} parent=0 // pred_fallthru
    _
  // Predicated region
  $region14: #{generator_forward.1} parent=0 // pred_check
    _
  $region15: #{generator_forward.1} parent=0 // pred_check_branch
    %21 = sbr.rel (0) target = $region17
  $region16: #{generator_forward.1} parent=0 // pred_region
    _
  $region17: #{generator_forward.1} parent=0 // pred_fallthru
    _
  // Predicated region
  $region18: #{generator_forward.1} parent=0 // pred_check
    _
  $region19: #{generator_forward.1} parent=0 // pred_check_branch
    %23 = sbr.rel (0) target = $region21
  $region20: #{generator_forward.1} parent=0 // pred_region
    _
  $region21: #{generator_forward.1} parent=0 // pred_fallthru
    _
  // Predicated region
  $region22: #{generator_forward.1} parent=0 // pred_check
    _
  $region23: #{generator_forward.1} parent=0 // pred_check_branch
    %25 = sbr.rel (0) target = $region25
  $region24: #{generator_forward.1} parent=0 // pred_region
    _
  $region25: #{generator_forward.1} parent=0 // pred_fallthru
    _
  // Predicated region
  $region26: #{generator_forward.1} parent=0 // pred_check
    _
  $region27: #{generator_forward.1} parent=0 // pred_check_branch
    %27 = sbr.rel (0) target = $region29
  $region28: #{generator_forward.1} parent=0 // pred_region
    _
  $region29: #{generator_forward.1} parent=0 // pred_fallthru
    _
  // Predicated region
  $region30: #{generator_forward.1} parent=0 // pred_check
    _
  $region31: #{generator_forward.1} parent=0 // pred_check_branch
    %29 = sbr.rel (0) target = $region33
  $region32: #{generator_forward.1} parent=0 // pred_region
    _
  $region33: #{generator_forward.1} parent=0 // pred_fallthru
    _
  // Predicated region
  $region34: #{generator_forward.1} parent=0 // pred_check
    _
  $region35: #{generator_forward.1} parent=0 // pred_check_branch
    %31 = sbr.rel (0) target = $region37
  $region36: #{generator_forward.1} parent=0 // pred_region
    _
  $region37: #{generator_forward.1} parent=0 // pred_fallthru
    _
  %v32 = vld [vmem:[%s0] sm:$0xff]
  %v33 = vld [vmem:[%s0 + $0x8] sm:$0xff]
  %v34 = vld [vmem:[%s0 + $0x10] sm:$0xff]
  %v35 = vld [vmem:[%s0 + $0x18] sm:$0xff]
  %v36 = vld [vmem:[%s0 + $0x20] sm:$0xff]
  %v37 = vld [vmem:[%s0 + $0x28] sm:$0xff]
  %v38 = vld [vmem:[%s0 + $0x30] sm:$0xff]
  %v39 = vld [vmem:[%s0 + $0x38] sm:$0xff]
  %v40 = vld [vmem:[%s1] sm:$0xff]
  %v41 = vld [vmem:[%s1 + $0x8] sm:$0xff]
  %v42 = vld [vmem:[%s1 + $0x10] sm:$0xff]
  %v43 = vld [vmem:[%s1 + $0x18] sm:$0xff]
  %v44 = vld [vmem:[%s2] sm:$0xff]
  %v45 = vld [vmem:[%s2 + $0x8] sm:$0xff]
  %v46 = vld [vmem:[%s2 + $0x10] sm:$0xff]
  %v47 = vld [vmem:[%s2 + $0x18] sm:$0xff]
  %49 = vset.pattern.permute.xlu0 0
  %50 = vperm.xlu0 %49, %v44
  %v51 = vpop.permute.xlu0 %50
  %54 = vset.pattern.permute.xlu0 0
  %55 = vperm.xlu0 %54, %v45
  %v56 = vpop.permute.xlu0 %55
  %59 = vset.pattern.permute.xlu0 0
  %60 = vperm.xlu0 %59, %v46
  %v61 = vpop.permute.xlu0 %60
  %64 = vset.pattern.permute.xlu0 0
  %65 = vperm.xlu0 %64, %v47
  %v66 = vpop.permute.xlu0 %65
  %vm68 = vcmask 130048
  %v70 = vsel %vm68, %v40, 0
  %v73 = vsel %vm68, %v41, 0
  %v76 = vsel %vm68, %v42, 0
  %v79 = vsel %vm68, %v43, 0
  %81 = vmatprep.subr.mxu0 %v33
  %82 = vmatpush1.msra.mxu0 %v32
  %83 = vmatprep.subr.mxu0 %v37
  %84 = vmatpush1.msra.mxu0 %v36
  %85 = vmatprep.subr.mxu0 0.0
  %86 = vmatpush1.msra.mxu0 0.0
  %87 = vmatprep.subr.mxu0 0.0
  %88 = vmatpush1.msra.mxu0 0.0
  %89 = vmatprep.subr.mxu0 0.0
  %90 = vmatpush1.msra.mxu0 0.0
  %91 = vmatprep.subr.mxu0 0.0
  %92 = vmatpush1.msra.mxu0 0.0
  %93 = vmatprep.subr.mxu0 0.0
  %94 = vmatpush1.msra.mxu0 0.0
  %95 = vmatprep.subr.mxu0 0.0
  %96 = vmatpush1.msra.mxu0 0.0
  %97 = vmatprep.subr.mxu0 0.0
  %98 = vmatpush1.msra.mxu0 0.0
  %99 = vmatprep.subr.mxu0 0.0
  %100 = vmatpush1.msra.mxu0 0.0
  %101 = vmatprep.subr.mxu0 0.0
  %102 = vmatpush1.msra.mxu0 0.0
  %103 = vmatprep.subr.mxu0 0.0
  %104 = vmatpush1.msra.mxu0 0.0
  %105 = vmatprep.subr.mxu0 0.0
  %106 = vmatpush1.msra.mxu0 0.0
  %107 = vmatprep.subr.mxu0 0.0
  %108 = vmatpush1.msra.mxu0 0.0
  %109 = vmatprep.subr.mxu0 0.0
  %110 = vmatpush1.msra.mxu0 0.0
  %111 = vmatprep.subr.mxu0 0.0
  %112 = vmatpush1.msra.mxu0 0.0
  %113 = vmatprep.subr.mxu0 0.0
  %114 = vmatpush1.msra.mxu0 0.0
  %115 = vmatprep.subr.mxu0 0.0
  %116 = vmatpush1.msra.mxu0 0.0
  %117 = vmatprep.subr.mxu0 0.0
  %118 = vmatpush1.msra.mxu0 0.0
  %119 = vmatprep.subr.mxu0 0.0
  %120 = vmatpush1.msra.mxu0 0.0
  %121 = vmatprep.subr.mxu0 0.0
  %122 = vmatpush1.msra.mxu0 0.0
  %123 = vmatprep.subr.mxu0 0.0
  %124 = vmatpush1.msra.mxu0 0.0
  %125 = vmatprep.subr.mxu0 0.0
  %126 = vmatpush1.msra.mxu0 0.0
  %127 = vmatprep.subr.mxu0 0.0
  %128 = vmatpush1.msra.mxu0 0.0
  %129 = vmatprep.subr.mxu0 0.0
  %130 = vmatpush1.msra.mxu0 0.0
  %131 = vmatprep.subr.mxu0 0.0
  %132 = vmatpush1.msra.mxu0 0.0
  %133 = vmatprep.subr.mxu0 0.0
  %134 = vmatpush1.msra.mxu0 0.0
  %135 = vmatprep.subr.mxu0 0.0
  %136 = vmatpush1.msra.mxu0 0.0
  %137 = vmatprep.subr.mxu0 0.0
  %138 = vmatpush1.msra.mxu0 0.0
  %139 = vmatprep.subr.mxu0 0.0
  %140 = vmatpush1.msra.mxu0 0.0
  %141 = vmatprep.subr.mxu0 0.0
  %142 = vmatpush1.msra.mxu0 0.0
  %143 = vmatprep.subr.mxu0 0.0
  %144 = vmatpush1.msra.mxu0 0.0
  %145 = vmatprep.mubr.f32.mxu0 0.0
  %146 = vmatmul.mubr.f32.gmra.mrb[0].mxu0 %v70
  %v147 = vpop.f32.mrb[0].mxu0
  %v148 = vadd.f32 %v51, %v147
  %v149 = vpop.f32.mrb[0].mxu0
  %v150 = vadd.f32 %v51, %v149
  %151 = vmatprep.mubr.f32.mxu0 0.0
  %152 = vmatmul.mubr.f32.gmra.mrb[0].mxu0 %v73
  %v153 = vpop.f32.mrb[0].mxu0
  %v154 = vadd.f32 %v56, %v153
  %v155 = vpop.f32.mrb[0].mxu0
  %v156 = vadd.f32 %v56, %v155
  %157 = vmatprep.mubr.f32.mxu0 0.0
  %158 = vmatmul.mubr.f32.gmra.mrb[0].mxu0 %v76
  %v159 = vpop.f32.mrb[0].mxu0
  %v160 = vadd.f32 %v61, %v159
  %v161 = vpop.f32.mrb[0].mxu0
  %v162 = vadd.f32 %v61, %v161
  %163 = vmatprep.mubr.f32.mxu0 0.0
  %164 = vmatmul.mubr.f32.gmra.mrb[0].mxu0 %v79
  %v165 = vpop.f32.mrb[0].mxu0
  %v166 = vadd.f32 %v66, %v165
  %v167 = vpop.f32.mrb[0].mxu0
  %v168 = vadd.f32 %v66, %v167
  %169 = vdwg.mxu0
  %170 = vmatprep.subr.mxu0 %v35
  %171 = vmatpush1.msra.mxu0 %v34
  %172 = vmatprep.subr.mxu0 %v39
  %173 = vmatpush1.msra.mxu0 %v38
  %174 = vmatprep.subr.mxu0 0.0
  %175 = vmatpush1.msra.mxu0 0.0
  %176 = vmatprep.subr.mxu0 0.0
  %177 = vmatpush1.msra.mxu0 0.0
  %178 = vmatprep.subr.mxu0 0.0
  %179 = vmatpush1.msra.mxu0 0.0
  %180 = vmatprep.subr.mxu0 0.0
  %181 = vmatpush1.msra.mxu0 0.0
  %182 = vmatprep.subr.mxu0 0.0
  %183 = vmatpush1.msra.mxu0 0.0
  %184 = vmatprep.subr.mxu0 0.0
  %185 = vmatpush1.msra.mxu0 0.0
  %186 = vmatprep.subr.mxu0 0.0
  %187 = vmatpush1.msra.mxu0 0.0
  %188 = vmatprep.subr.mxu0 0.0
  %189 = vmatpush1.msra.mxu0 0.0
  %190 = vmatprep.subr.mxu0 0.0
  %191 = vmatpush1.msra.mxu0 0.0
  %192 = vmatprep.subr.mxu0 0.0
  %193 = vmatpush1.msra.mxu0 0.0
  %194 = vmatprep.subr.mxu0 0.0
  %195 = vmatpush1.msra.mxu0 0.0
  %196 = vmatprep.subr.mxu0 0.0
  %197 = vmatpush1.msra.mxu0 0.0
  %198 = vmatprep.subr.mxu0 0.0
  %199 = vmatpush1.msra.mxu0 0.0
  %200 = vmatprep.subr.mxu0 0.0
  %201 = vmatpush1.msra.mxu0 0.0
  %202 = vmatprep.subr.mxu0 0.0
  %203 = vmatpush1.msra.mxu0 0.0
  %204 = vmatprep.subr.mxu0 0.0
  %205 = vmatpush1.msra.mxu0 0.0
  %206 = vmatprep.subr.mxu0 0.0
  %207 = vmatpush1.msra.mxu0 0.0
  %208 = vmatprep.subr.mxu0 0.0
  %209 = vmatpush1.msra.mxu0 0.0
  %210 = vmatprep.subr.mxu0 0.0
  %211 = vmatpush1.msra.mxu0 0.0
  %212 = vmatprep.subr.mxu0 0.0
  %213 = vmatpush1.msra.mxu0 0.0
  %214 = vmatprep.subr.mxu0 0.0
  %215 = vmatpush1.msra.mxu0 0.0
  %216 = vmatprep.subr.mxu0 0.0
  %217 = vmatpush1.msra.mxu0 0.0
  %218 = vmatprep.subr.mxu0 0.0
  %219 = vmatpush1.msra.mxu0 0.0
  %220 = vmatprep.subr.mxu0 0.0
  %221 = vmatpush1.msra.mxu0 0.0
  %222 = vmatprep.subr.mxu0 0.0
  %223 = vmatpush1.msra.mxu0 0.0
  %224 = vmatprep.subr.mxu0 0.0
  %225 = vmatpush1.msra.mxu0 0.0
  %226 = vmatprep.subr.mxu0 0.0
  %227 = vmatpush1.msra.mxu0 0.0
  %228 = vmatprep.subr.mxu0 0.0
  %229 = vmatpush1.msra.mxu0 0.0
  %230 = vmatprep.subr.mxu0 0.0
  %231 = vmatpush1.msra.mxu0 0.0
  %232 = vmatprep.subr.mxu0 0.0
  %233 = vmatpush1.msra.mxu0 0.0
  %234 = vmatprep.mubr.f32.mxu0 0.0
  %235 = vmatmul.mubr.f32.gmra.mrb[0].mxu0 %v70
  %v236 = vpop.f32.mrb[0].mxu0
  %v237 = vadd.f32 %v51, %v236
  %v238 = vpop.f32.mrb[0].mxu0
  %v239 = vadd.f32 %v51, %v238
  %240 = vmatprep.mubr.f32.mxu0 0.0
  %241 = vmatmul.mubr.f32.gmra.mrb[0].mxu0 %v73
  %v242 = vpop.f32.mrb[0].mxu0
  %v243 = vadd.f32 %v56, %v242
  %v244 = vpop.f32.mrb[0].mxu0
  %v245 = vadd.f32 %v56, %v244
  %246 = vmatprep.mubr.f32.mxu0 0.0
  %247 = vmatmul.mubr.f32.gmra.mrb[0].mxu0 %v76
  %v248 = vpop.f32.mrb[0].mxu0
  %v249 = vadd.f32 %v61, %v248
  %v250 = vpop.f32.mrb[0].mxu0
  %v251 = vadd.f32 %v61, %v250
  %252 = vmatprep.mubr.f32.mxu0 0.0
  %253 = vmatmul.mubr.f32.gmra.mrb[0].mxu0 %v79
  %v254 = vpop.f32.mrb[0].mxu0
  %v255 = vadd.f32 %v66, %v254
  %v256 = vpop.f32.mrb[0].mxu0
  %v257 = vadd.f32 %v66, %v256
  %258 = vdwg.mxu0
  %v259 = vmul.f32 %v148, 0.2
  %v260 = vmul.f32 %v150, 0.2
  %v261 = vmul.f32 %v237, 0.2
  %v262 = vmul.f32 %v239, 0.2
  %v263 = vmul.f32 %v154, 0.2
  %v264 = vmul.f32 %v156, 0.2
  %v265 = vmul.f32 %v243, 0.2
  %v266 = vmul.f32 %v245, 0.2
  %v267 = vmul.f32 %v160, 0.2
  %v268 = vmul.f32 %v162, 0.2
  %v269 = vmul.f32 %v249, 0.2
  %v270 = vmul.f32 %v251, 0.2
  %v271 = vmul.f32 %v166, 0.2
  %v272 = vmul.f32 %v168, 0.2
  %v273 = vmul.f32 %v255, 0.2
  %v274 = vmul.f32 %v257, 0.2
  %v275 = vmax.f32 %v148, %v259
  %v276 = vmax.f32 %v150, %v260
  %v277 = vmax.f32 %v237, %v261
  %v278 = vmax.f32 %v239, %v262
  %v279 = vmax.f32 %v154, %v263
  %v280 = vmax.f32 %v156, %v264
  %v281 = vmax.f32 %v243, %v265
  %v282 = vmax.f32 %v245, %v266
  %v283 = vmax.f32 %v160, %v267
  %v284 = vmax.f32 %v162, %v268
  %v285 = vmax.f32 %v249, %v269
  %v286 = vmax.f32 %v251, %v270
  %v287 = vmax.f32 %v166, %v271
  %v288 = vmax.f32 %v168, %v272
  %v289 = vmax.f32 %v255, %v273
  %v290 = vmax.f32 %v257, %v274
  %v291 = vld [vmem:[%s3] sm:$0xff]
  %v292 = vld [vmem:[%s3 + $0x8] sm:$0xff]
  %v293 = vld [vmem:[%s3 + $0x10] sm:$0xff]
  %v294 = vld [vmem:[%s3 + $0x18] sm:$0xff]
  %v295 = vld [vmem:[%s3 + $0x20] sm:$0xff]
  %v296 = vld [vmem:[%s3 + $0x28] sm:$0xff]
  %v297 = vld [vmem:[%s3 + $0x30] sm:$0xff]
  %v298 = vld [vmem:[%s3 + $0x38] sm:$0xff]
  %v299 = vld [vmem:[%s4] sm:$0xff]
  %v300 = vld [vmem:[%s4 + $0x8] sm:$0xff]
  %v301 = vld [vmem:[%s4 + $0x10] sm:$0xff]
  %v302 = vld [vmem:[%s4 + $0x18] sm:$0xff]
  %v303 = vld [vmem:[%s4 + $0x20] sm:$0xff]
  %v304 = vld [vmem:[%s4 + $0x28] sm:$0xff]
  %v305 = vld [vmem:[%s4 + $0x30] sm:$0xff]
  %v306 = vld [vmem:[%s4 + $0x38] sm:$0xff]
  %308 = vset.pattern.permute.xlu0 0
  %309 = vperm.xlu0 %308, %v299
  %v310 = vpop.permute.xlu0 %309
  %313 = vset.pattern.permute.xlu0 0
  %314 = vperm.xlu0 %313, %v300
  %v315 = vpop.permute.xlu0 %314
  %318 = vset.pattern.permute.xlu0 0
  %319 = vperm.xlu0 %318, %v301
  %v320 = vpop.permute.xlu0 %319
  %323 = vset.pattern.permute.xlu0 0
  %324 = vperm.xlu0 %323, %v302
  %v325 = vpop.permute.xlu0 %324
  %328 = vset.pattern.permute.xlu0 0
  %329 = vperm.xlu0 %328, %v303
  %v330 = vpop.permute.xlu0 %329
  %333 = vset.pattern.permute.xlu0 0
  %334 = vperm.xlu0 %333, %v304
  %v335 = vpop.permute.xlu0 %334
  %338 = vset.pattern.permute.xlu0 0
  %339 = vperm.xlu0 %338, %v305
  %v340 = vpop.permute.xlu0 %339
  %343 = vset.pattern.permute.xlu0 0
  %344 = vperm.xlu0 %343, %v306
  %v345 = vpop.permute.xlu0 %344
  %vm347 = vcmask 261120
  %v349 = vsel %vm347, %v291, 0
  %v352 = vsel %vm347, %v292, 0
  %v355 = vsel %vm347, %v293, 0
  %v358 = vsel %vm347, %v294, 0
  %v361 = vsel %vm347, %v295, 0
  %v364 = vsel %vm347, %v296, 0
  %v367 = vsel %vm347, %v297, 0
  %v370 = vsel %vm347, %v298, 0
  %372 = vmatprep.subr.mxu0 %v276
  %373 = vmatpush1.msra.mxu0 %v275
  %374 = vmatprep.subr.mxu0 %v280
  %375 = vmatpush1.msra.mxu0 %v279
  %376 = vmatprep.subr.mxu0 %v284
  %377 = vmatpush1.msra.mxu0 %v283
  %378 = vmatprep.subr.mxu0 %v288
  %379 = vmatpush1.msra.mxu0 %v287
  %380 = vmatprep.subr.mxu0 0.0
  %381 = vmatpush1.msra.mxu0 0.0
  %382 = vmatprep.subr.mxu0 0.0
  %383 = vmatpush1.msra.mxu0 0.0
  %384 = vmatprep.subr.mxu0 0.0
  %385 = vmatpush1.msra.mxu0 0.0
  %386 = vmatprep.subr.mxu0 0.0
  %387 = vmatpush1.msra.mxu0 0.0
  %388 = vmatprep.subr.mxu0 0.0
  %389 = vmatpush1.msra.mxu0 0.0
  %390 = vmatprep.subr.mxu0 0.0
  %391 = vmatpush1.msra.mxu0 0.0
  %392 = vmatprep.subr.mxu0 0.0
  %393 = vmatpush1.msra.mxu0 0.0
  %394 = vmatprep.subr.mxu0 0.0
  %395 = vmatpush1.msra.mxu0 0.0
  %396 = vmatprep.subr.mxu0 0.0
  %397 = vmatpush1.msra.mxu0 0.0
  %398 = vmatprep.subr.mxu0 0.0
  %399 = vmatpush1.msra.mxu0 0.0
  %400 = vmatprep.subr.mxu0 0.0
  %401 = vmatpush1.msra.mxu0 0.0
  %402 = vmatprep.subr.mxu0 0.0
  %403 = vmatpush1.msra.mxu0 0.0
  %404 = vmatprep.subr.mxu0 0.0
  %405 = vmatpush1.msra.mxu0 0.0
  %406 = vmatprep.subr.mxu0 0.0
  %407 = vmatpush1.msra.mxu0 0.0
  %408 = vmatprep.subr.mxu0 0.0
  %409 = vmatpush1.msra.mxu0 0.0
  %410 = vmatprep.subr.mxu0 0.0
  %411 = vmatpush1.msra.mxu0 0.0
  %412 = vmatprep.subr.mxu0 0.0
  %413 = vmatpush1.msra.mxu0 0.0
  %414 = vmatprep.subr.mxu0 0.0
  %415 = vmatpush1.msra.mxu0 0.0
  %416 = vmatprep.subr.mxu0 0.0
  %417 = vmatpush1.msra.mxu0 0.0
  %418 = vmatprep.subr.mxu0 0.0
  %419 = vmatpush1.msra.mxu0 0.0
  %420 = vmatprep.subr.mxu0 0.0
  %421 = vmatpush1.msra.mxu0 0.0
  %422 = vmatprep.subr.mxu0 0.0
  %423 = vmatpush1.msra.mxu0 0.0
  %424 = vmatprep.subr.mxu0 0.0
  %425 = vmatpush1.msra.mxu0 0.0
  %426 = vmatprep.subr.mxu0 0.0
  %427 = vmatpush1.msra.mxu0 0.0
  %428 = vmatprep.subr.mxu0 0.0
  %429 = vmatpush1.msra.mxu0 0.0
  %430 = vmatprep.subr.mxu0 0.0
  %431 = vmatpush1.msra.mxu0 0.0
  %432 = vmatprep.subr.mxu0 0.0
  %433 = vmatpush1.msra.mxu0 0.0
  %434 = vmatprep.subr.mxu0 0.0
  %435 = vmatpush1.msra.mxu0 0.0
  %436 = vmatprep.mubr.f32.mxu0 0.0
  %437 = vmatmul.mubr.f32.gmra.mrb[0].mxu0 %v349
  %v438 = vpop.f32.mrb[0].mxu0
  %v439 = vadd.f32 %v310, %v438
  %v440 = vpop.f32.mrb[0].mxu0
  %v441 = vadd.f32 %v310, %v440
  %442 = vmatprep.mubr.f32.mxu0 0.0
  %443 = vmatmul.mubr.f32.gmra.mrb[0].mxu0 %v352
  %v444 = vpop.f32.mrb[0].mxu0
  %v445 = vadd.f32 %v315, %v444
  %v446 = vpop.f32.mrb[0].mxu0
  %v447 = vadd.f32 %v315, %v446
  %448 = vmatprep.mubr.f32.mxu0 0.0
  %449 = vmatmul.mubr.f32.gmra.mrb[0].mxu0 %v355
  %v450 = vpop.f32.mrb[0].mxu0
  %v451 = vadd.f32 %v320, %v450
  %v452 = vpop.f32.mrb[0].mxu0
  %v453 = vadd.f32 %v320, %v452
  %454 = vmatprep.mubr.f32.mxu0 0.0
  %455 = vmatmul.mubr.f32.gmra.mrb[0].mxu0 %v358
  %v456 = vpop.f32.mrb[0].mxu0
  %v457 = vadd.f32 %v325, %v456
  %v458 = vpop.f32.mrb[0].mxu0
  %v459 = vadd.f32 %v325, %v458
  %460 = vmatprep.mubr.f32.mxu0 0.0
  %461 = vmatmul.mubr.f32.gmra.mrb[0].mxu0 %v361
  %v462 = vpop.f32.mrb[0].mxu0
  %v463 = vadd.f32 %v330, %v462
  %v464 = vpop.f32.mrb[0].mxu0
  %v465 = vadd.f32 %v330, %v464
  %466 = vmatprep.mubr.f32.mxu0 0.0
  %467 = vmatmul.mubr.f32.gmra.mrb[0].mxu0 %v364
  %v468 = vpop.f32.mrb[0].mxu0
  %v469 = vadd.f32 %v335, %v468
  %v470 = vpop.f32.mrb[0].mxu0
  %v471 = vadd.f32 %v335, %v470
  %472 = vmatprep.mubr.f32.mxu0 0.0
  %473 = vmatmul.mubr.f32.gmra.mrb[0].mxu0 %v367
  %v474 = vpop.f32.mrb[0].mxu0
  %v475 = vadd.f32 %v340, %v474
  %v476 = vpop.f32.mrb[0].mxu0
  %v477 = vadd.f32 %v340, %v476
  %478 = vmatprep.mubr.f32.mxu0 0.0
  %479 = vmatmul.mubr.f32.gmra.mrb[0].mxu0 %v370
  %v480 = vpop.f32.mrb[0].mxu0
  %v481 = vadd.f32 %v345, %v480
  %v482 = vpop.f32.mrb[0].mxu0
  %v483 = vadd.f32 %v345, %v482
  %484 = vdwg.mxu0
  %485 = vmatprep.subr.mxu0 %v278
  %486 = vmatpush1.msra.mxu0 %v277
  %487 = vmatprep.subr.mxu0 %v282
  %488 = vmatpush1.msra.mxu0 %v281
  %489 = vmatprep.subr.mxu0 %v286
  %490 = vmatpush1.msra.mxu0 %v285
  %491 = vmatprep.subr.mxu0 %v290
  %492 = vmatpush1.msra.mxu0 %v289
  %493 = vmatprep.subr.mxu0 0.0
  %494 = vmatpush1.msra.mxu0 0.0
  %495 = vmatprep.subr.mxu0 0.0
  %496 = vmatpush1.msra.mxu0 0.0
  %497 = vmatprep.subr.mxu0 0.0
  %498 = vmatpush1.msra.mxu0 0.0
  %499 = vmatprep.subr.mxu0 0.0
  %500 = vmatpush1.msra.mxu0 0.0
  %501 = vmatprep.subr.mxu0 0.0
  %502 = vmatpush1.msra.mxu0 0.0
  %503 = vmatprep.subr.mxu0 0.0
  %504 = vmatpush1.msra.mxu0 0.0
  %505 = vmatprep.subr.mxu0 0.0
  %506 = vmatpush1.msra.mxu0 0.0
  %507 = vmatprep.subr.mxu0 0.0
  %508 = vmatpush1.msra.mxu0 0.0
  %509 = vmatprep.subr.mxu0 0.0
  %510 = vmatpush1.msra.mxu0 0.0
  %511 = vmatprep.subr.mxu0 0.0
  %512 = vmatpush1.msra.mxu0 0.0
  %513 = vmatprep.subr.mxu0 0.0
  %514 = vmatpush1.msra.mxu0 0.0
  %515 = vmatprep.subr.mxu0 0.0
  %516 = vmatpush1.msra.mxu0 0.0
  %517 = vmatprep.subr.mxu0 0.0
  %518 = vmatpush1.msra.mxu0 0.0
  %519 = vmatprep.subr.mxu0 0.0
  %520 = vmatpush1.msra.mxu0 0.0
  %521 = vmatprep.subr.mxu0 0.0
  %522 = vmatpush1.msra.mxu0 0.0
  %523 = vmatprep.subr.mxu0 0.0
  %524 = vmatpush1.msra.mxu0 0.0
  %525 = vmatprep.subr.mxu0 0.0
  %526 = vmatpush1.msra.mxu0 0.0
  %527 = vmatprep.subr.mxu0 0.0
  %528 = vmatpush1.msra.mxu0 0.0
  %529 = vmatprep.subr.mxu0 0.0
  %530 = vmatpush1.msra.mxu0 0.0
  %531 = vmatprep.subr.mxu0 0.0
  %532 = vmatpush1.msra.mxu0 0.0
  %533 = vmatprep.subr.mxu0 0.0
  %534 = vmatpush1.msra.mxu0 0.0
  %535 = vmatprep.subr.mxu0 0.0
  %536 = vmatpush1.msra.mxu0 0.0
  %537 = vmatprep.subr.mxu0 0.0
  %538 = vmatpush1.msra.mxu0 0.0
  %539 = vmatprep.subr.mxu0 0.0
  %540 = vmatpush1.msra.mxu0 0.0
  %541 = vmatprep.subr.mxu0 0.0
  %542 = vmatpush1.msra.mxu0 0.0
  %543 = vmatprep.subr.mxu0 0.0
  %544 = vmatpush1.msra.mxu0 0.0
  %545 = vmatprep.subr.mxu0 0.0
  %546 = vmatpush1.msra.mxu0 0.0
  %547 = vmatprep.subr.mxu0 0.0
  %548 = vmatpush1.msra.mxu0 0.0
  %549 = vmatprep.mubr.f32.mxu0 0.0
  %550 = vmatmul.mubr.f32.gmra.mrb[0].mxu0 %v349
  %v551 = vpop.f32.mrb[0].mxu0
  %v552 = vadd.f32 %v310, %v551
  %v553 = vpop.f32.mrb[0].mxu0
  %v554 = vadd.f32 %v310, %v553
  %555 = vmatprep.mubr.f32.mxu0 0.0
  %556 = vmatmul.mubr.f32.gmra.mrb[0].mxu0 %v352
  %v557 = vpop.f32.mrb[0].mxu0
  %v558 = vadd.f32 %v315, %v557
  %v559 = vpop.f32.mrb[0].mxu0
  %v560 = vadd.f32 %v315, %v559
  %561 = vmatprep.mubr.f32.mxu0 0.0
  %562 = vmatmul.mubr.f32.gmra.mrb[0].mxu0 %v355
  %v563 = vpop.f32.mrb[0].mxu0
  %v564 = vadd.f32 %v320, %v563
  %v565 = vpop.f32.mrb[0].mxu0
  %v566 = vadd.f32 %v320, %v565
  %567 = vmatprep.mubr.f32.mxu0 0.0
  %568 = vmatmul.mubr.f32.gmra.mrb[0].mxu0 %v358
  %v569 = vpop.f32.mrb[0].mxu0
  %v570 = vadd.f32 %v325, %v569
  %v571 = vpop.f32.mrb[0].mxu0
  %v572 = vadd.f32 %v325, %v571
  %573 = vmatprep.mubr.f32.mxu0 0.0
  %574 = vmatmul.mubr.f32.gmra.mrb[0].mxu0 %v361
  %v575 = vpop.f32.mrb[0].mxu0
  %v576 = vadd.f32 %v330, %v575
  %v577 = vpop.f32.mrb[0].mxu0
  %v578 = vadd.f32 %v330, %v577
  %579 = vmatprep.mubr.f32.mxu0 0.0
  %580 = vmatmul.mubr.f32.gmra.mrb[0].mxu0 %v364
  %v581 = vpop.f32.mrb[0].mxu0
  %v582 = vadd.f32 %v335, %v581
  %v583 = vpop.f32.mrb[0].mxu0
  %v584 = vadd.f32 %v335, %v583
  %585 = vmatprep.mubr.f32.mxu0 0.0
  %586 = vmatmul.mubr.f32.gmra.mrb[0].mxu0 %v367
  %v587 = vpop.f32.mrb[0].mxu0
  %v588 = vadd.f32 %v340, %v587
  %v589 = vpop.f32.mrb[0].mxu0
  %v590 = vadd.f32 %v340, %v589
  %591 = vmatprep.mubr.f32.mxu0 0.0
  %592 = vmatmul.mubr.f32.gmra.mrb[0].mxu0 %v370
  %v593 = vpop.f32.mrb[0].mxu0
  %v594 = vadd.f32 %v345, %v593
  %v595 = vpop.f32.mrb[0].mxu0
  %v596 = vadd.f32 %v345, %v595
  %597 = vdwg.mxu0
  %v598 = vmul.f32 %v439, 0.2
  %v599 = vmul.f32 %v441, 0.2
  %v600 = vmul.f32 %v552, 0.2
  %v601 = vmul.f32 %v554, 0.2
  %v602 = vmul.f32 %v445, 0.2
  %v603 = vmul.f32 %v447, 0.2
  %v604 = vmul.f32 %v558, 0.2
  %v605 = vmul.f32 %v560, 0.2
  %v606 = vmul.f32 %v451, 0.2
  %v607 = vmul.f32 %v453, 0.2
  %v608 = vmul.f32 %v564, 0.2
  %v609 = vmul.f32 %v566, 0.2
  %v610 = vmul.f32 %v457, 0.2
  %v611 = vmul.f32 %v459, 0.2
  %v612 = vmul.f32 %v570, 0.2
  %v613 = vmul.f32 %v572, 0.2
  %v614 = vmul.f32 %v463, 0.2
  %v615 = vmul.f32 %v465, 0.2
  %v616 = vmul.f32 %v576, 0.2
  %v617 = vmul.f32 %v578, 0.2
  %v618 = vmul.f32 %v469, 0.2
  %v619 = vmul.f32 %v471, 0.2
  %v620 = vmul.f32 %v582, 0.2
  %v621 = vmul.f32 %v584, 0.2
  %v622 = vmul.f32 %v475, 0.2
  %v623 = vmul.f32 %v477, 0.2
  %v624 = vmul.f32 %v588, 0.2
  %v625 = vmul.f32 %v590, 0.2
  %v626 = vmul.f32 %v481, 0.2
  %v627 = vmul.f32 %v483, 0.2
  %v628 = vmul.f32 %v594, 0.2
  %v629 = vmul.f32 %v596, 0.2
  %v630 = vmax.f32 %v439, %v598
  %v631 = vmax.f32 %v441, %v599
  %v632 = vmax.f32 %v552, %v600
  %v633 = vmax.f32 %v554, %v601
  %v634 = vmax.f32 %v445, %v602
  %v635 = vmax.f32 %v447, %v603
  %v636 = vmax.f32 %v558, %v604
  %v637 = vmax.f32 %v560, %v605
  %v638 = vmax.f32 %v451, %v606
  %v639 = vmax.f32 %v453, %v607
  %v640 = vmax.f32 %v564, %v608
  %v641 = vmax.f32 %v566, %v609
  %v642 = vmax.f32 %v457, %v610
  %v643 = vmax.f32 %v459, %v611
  %v644 = vmax.f32 %v570, %v612
  %v645 = vmax.f32 %v572, %v613
  %v646 = vmax.f32 %v463, %v614
  %v647 = vmax.f32 %v465, %v615
  %v648 = vmax.f32 %v576, %v616
  %v649 = vmax.f32 %v578, %v617
  %v650 = vmax.f32 %v469, %v618
  %v651 = vmax.f32 %v471, %v619
  %v652 = vmax.f32 %v582, %v620
  %v653 = vmax.f32 %v584, %v621
  %v654 = vmax.f32 %v475, %v622
  %v655 = vmax.f32 %v477, %v623
  %v656 = vmax.f32 %v588, %v624
  %v657 = vmax.f32 %v590, %v625
  %v658 = vmax.f32 %v481, %v626
  %v659 = vmax.f32 %v483, %v627
  %v660 = vmax.f32 %v594, %v628
  %v661 = vmax.f32 %v596, %v629
  %v662 = vld [vmem:[%s5] sm:$0xff]
  %v663 = vld [vmem:[%s5 + $0x8] sm:$0xff]
  %v664 = vld [vmem:[%s5 + $0x10] sm:$0xff]
  %v665 = vld [vmem:[%s5 + $0x18] sm:$0xff]
  %v666 = vld [vmem:[%s5 + $0x20] sm:$0xff]
  %v667 = vld [vmem:[%s5 + $0x28] sm:$0xff]
  %v668 = vld [vmem:[%s5 + $0x30] sm:$0xff]
  %v669 = vld [vmem:[%s5 + $0x38] sm:$0xff]
  %v670 = vld [vmem:[%s5 + $0x40] sm:$0xff]
  %v671 = vld [vmem:[%s5 + $0x48] sm:$0xff]
  %v672 = vld [vmem:[%s5 + $0x50] sm:$0xff]
  %v673 = vld [vmem:[%s5 + $0x58] sm:$0xff]
  %v674 = vld [vmem:[%s5 + $0x60] sm:$0xff]
  %v675 = vld [vmem:[%s5 + $0x68] sm:$0xff]
  %v676 = vld [vmem:[%s5 + $0x70] sm:$0xff]
  %v677 = vld [vmem:[%s5 + $0x78] sm:$0xff]
  %v678 = vld [vmem:[%s6] sm:$0xff]
  %v679 = vld [vmem:[%s6 + $0x8] sm:$0xff]
  %v680 = vld [vmem:[%s6 + $0x10] sm:$0xff]
  %v681 = vld [vmem:[%s6 + $0x18] sm:$0xff]
  %v682 = vld [vmem:[%s6 + $0x20] sm:$0xff]
  %v683 = vld [vmem:[%s6 + $0x28] sm:$0xff]
  %v684 = vld [vmem:[%s6 + $0x30] sm:$0xff]
  %v685 = vld [vmem:[%s6 + $0x38] sm:$0xff]
  %v686 = vld [vmem:[%s6 + $0x40] sm:$0xff]
  %v687 = vld [vmem:[%s6 + $0x48] sm:$0xff]
  %v688 = vld [vmem:[%s6 + $0x50] sm:$0xff]
  %v689 = vld [vmem:[%s6 + $0x58] sm:$0xff]
  %v690 = vld [vmem:[%s6 + $0x60] sm:$0xff]
  %v691 = vld [vmem:[%s6 + $0x68] sm:$0xff]
  %v692 = vld [vmem:[%s6 + $0x70] sm:$0xff]
  %v693 = vld [vmem:[%s6 + $0x78] sm:$0xff]
  %695 = vset.pattern.permute.xlu0 0
  %696 = vperm.xlu0 %695, %v678
  %v697 = vpop.permute.xlu0 %696
  %700 = vset.pattern.permute.xlu0 0
  %701 = vperm.xlu0 %700, %v679
  %v702 = vpop.permute.xlu0 %701
  %705 = vset.pattern.permute.xlu0 0
  %706 = vperm.xlu0 %705, %v680
  %v707 = vpop.permute.xlu0 %706
  %710 = vset.pattern.permute.xlu0 0
  %711 = vperm.xlu0 %710, %v681
  %v712 = vpop.permute.xlu0 %711
  %715 = vset.pattern.permute.xlu0 0
  %716 = vperm.xlu0 %715, %v682
  %v717 = vpop.permute.xlu0 %716
  %720 = vset.pattern.permute.xlu0 0
  %721 = vperm.xlu0 %720, %v683
  %v722 = vpop.permute.xlu0 %721
  %725 = vset.pattern.permute.xlu0 0
  %726 = vperm.xlu0 %725, %v684
  %v727 = vpop.permute.xlu0 %726
  %730 = vset.pattern.permute.xlu0 0
  %731 = vperm.xlu0 %730, %v685
  %v732 = vpop.permute.xlu0 %731
  %735 = vset.pattern.permute.xlu0 0
  %736 = vperm.xlu0 %735, %v686
  %v737 = vpop.permute.xlu0 %736
  %740 = vset.pattern.permute.xlu0 0
  %741 = vperm.xlu0 %740, %v687
  %v742 = vpop.permute.xlu0 %741
  %745 = vset.pattern.permute.xlu0 0
  %746 = vperm.xlu0 %745, %v688
  %v747 = vpop.permute.xlu0 %746
  %750 = vset.pattern.permute.xlu0 0
  %751 = vperm.xlu0 %750, %v689
  %v752 = vpop.permute.xlu0 %751
  %755 = vset.pattern.permute.xlu0 0
  %756 = vperm.xlu0 %755, %v690
  %v757 = vpop.permute.xlu0 %756
  %760 = vset.pattern.permute.xlu0 0
  %761 = vperm.xlu0 %760, %v691
  %v762 = vpop.permute.xlu0 %761
  %765 = vset.pattern.permute.xlu0 0
  %766 = vperm.xlu0 %765, %v692
  %v767 = vpop.permute.xlu0 %766
  %770 = vset.pattern.permute.xlu0 0
  %771 = vperm.xlu0 %770, %v693
  %v772 = vpop.permute.xlu0 %771
  %vm774 = vcmask 523264
  %v776 = vsel %vm774, %v662, 0
  %v779 = vsel %vm774, %v663, 0
  %v782 = vsel %vm774, %v664, 0
  %v785 = vsel %vm774, %v665, 0
  %v788 = vsel %vm774, %v666, 0
  %v791 = vsel %vm774, %v667, 0
  %v794 = vsel %vm774, %v668, 0
  %v797 = vsel %vm774, %v669, 0
  %v800 = vsel %vm774, %v670, 0
  %v803 = vsel %vm774, %v671, 0
  %v806 = vsel %vm774, %v672, 0
  %v809 = vsel %vm774, %v673, 0
  %v812 = vsel %vm774, %v674, 0
  %v815 = vsel %vm774, %v675, 0
  %v818 = vsel %vm774, %v676, 0
  %v821 = vsel %vm774, %v677, 0
  %823 = vmatprep.subr.mxu0 %v631
  %824 = vmatpush1.msra.mxu0 %v630
  %825 = vmatprep.subr.mxu0 %v635
  %826 = vmatpush1.msra.mxu0 %v634
  %827 = vmatprep.subr.mxu0 %v639
  %828 = vmatpush1.msra.mxu0 %v638
  %829 = vmatprep.subr.mxu0 %v643
  %830 = vmatpush1.msra.mxu0 %v642
  %831 = vmatprep.subr.mxu0 %v647
  %832 = vmatpush1.msra.mxu0 %v646
  %833 = vmatprep.subr.mxu0 %v651
  %834 = vmatpush1.msra.mxu0 %v650
  %835 = vmatprep.subr.mxu0 %v655
  %836 = vmatpush1.msra.mxu0 %v654
  %837 = vmatprep.subr.mxu0 %v659
  %838 = vmatpush1.msra.mxu0 %v658
  %839 = vmatprep.subr.mxu0 0.0
  %840 = vmatpush1.msra.mxu0 0.0
  %841 = vmatprep.subr.mxu0 0.0
  %842 = vmatpush1.msra.mxu0 0.0
  %843 = vmatprep.subr.mxu0 0.0
  %844 = vmatpush1.msra.mxu0 0.0
  %845 = vmatprep.subr.mxu0 0.0
  %846 = vmatpush1.msra.mxu0 0.0
  %847 = vmatprep.subr.mxu0 0.0
  %848 = vmatpush1.msra.mxu0 0.0
  %849 = vmatprep.subr.mxu0 0.0
  %850 = vmatpush1.msra.mxu0 0.0
  %851 = vmatprep.subr.mxu0 0.0
  %852 = vmatpush1.msra.mxu0 0.0
  %853 = vmatprep.subr.mxu0 0.0
  %854 = vmatpush1.msra.mxu0 0.0
  %855 = vmatprep.subr.mxu0 0.0
  %856 = vmatpush1.msra.mxu0 0.0
  %857 = vmatprep.subr.mxu0 0.0
  %858 = vmatpush1.msra.mxu0 0.0
  %859 = vmatprep.subr.mxu0 0.0
  %860 = vmatpush1.msra.mxu0 0.0
  %861 = vmatprep.subr.mxu0 0.0
  %862 = vmatpush1.msra.mxu0 0.0
  %863 = vmatprep.subr.mxu0 0.0
  %864 = vmatpush1.msra.mxu0 0.0
  %865 = vmatprep.subr.mxu0 0.0
  %866 = vmatpush1.msra.mxu0 0.0
  %867 = vmatprep.subr.mxu0 0.0
  %868 = vmatpush1.msra.mxu0 0.0
  %869 = vmatprep.subr.mxu0 0.0
  %870 = vmatpush1.msra.mxu0 0.0
  %871 = vmatprep.subr.mxu0 0.0
  %872 = vmatpush1.msra.mxu0 0.0
  %873 = vmatprep.subr.mxu0 0.0
  %874 = vmatpush1.msra.mxu0 0.0
  %875 = vmatprep.subr.mxu0 0.0
  %876 = vmatpush1.msra.mxu0 0.0
  %877 = vmatprep.subr.mxu0 0.0
  %878 = vmatpush1.msra.mxu0 0.0
  %879 = vmatprep.subr.mxu0 0.0
  %880 = vmatpush1.msra.mxu0 0.0
  %881 = vmatprep.subr.mxu0 0.0
  %882 = vmatpush1.msra.mxu0 0.0
  %883 = vmatprep.subr.mxu0 0.0
  %884 = vmatpush1.msra.mxu0 0.0
  %885 = vmatprep.subr.mxu0 0.0
  %886 = vmatpush1.msra.mxu0 0.0
  %887 = vmatprep.mubr.f32.mxu0 0.0
  %888 = vmatmul.mubr.f32.gmra.mrb[0].mxu0 %v776
  %v889 = vpop.f32.mrb[0].mxu0
  %v890 = vadd.f32 %v697, %v889
  %v891 = vpop.f32.mrb[0].mxu0
  %v892 = vadd.f32 %v697, %v891
  %893 = vmatprep.mubr.f32.mxu0 0.0
  %894 = vmatmul.mubr.f32.gmra.mrb[0].mxu0 %v779
  %v895 = vpop.f32.mrb[0].mxu0
  %v896 = vadd.f32 %v702, %v895
  %v897 = vpop.f32.mrb[0].mxu0
  %v898 = vadd.f32 %v702, %v897
  %899 = vmatprep.mubr.f32.mxu0 0.0
  %900 = vmatmul.mubr.f32.gmra.mrb[0].mxu0 %v782
  %v901 = vpop.f32.mrb[0].mxu0
  %v902 = vadd.f32 %v707, %v901
  %v903 = vpop.f32.mrb[0].mxu0
  %v904 = vadd.f32 %v707, %v903
  %905 = vmatprep.mubr.f32.mxu0 0.0
  %906 = vmatmul.mubr.f32.gmra.mrb[0].mxu0 %v785
  %v907 = vpop.f32.mrb[0].mxu0
  %v908 = vadd.f32 %v712, %v907
  %v909 = vpop.f32.mrb[0].mxu0
  %v910 = vadd.f32 %v712, %v909
  %911 = vmatprep.mubr.f32.mxu0 0.0
  %912 = vmatmul.mubr.f32.gmra.mrb[0].mxu0 %v788
  %v913 = vpop.f32.mrb[0].mxu0
  %v914 = vadd.f32 %v717, %v913
  %v915 = vpop.f32.mrb[0].mxu0
  %v916 = vadd.f32 %v717, %v915
  %917 = vmatprep.mubr.f32.mxu0 0.0
  %918 = vmatmul.mubr.f32.gmra.mrb[0].mxu0 %v791
  %v919 = vpop.f32.mrb[0].mxu0
  %v920 = vadd.f32 %v722, %v919
  %v921 = vpop.f32.mrb[0].mxu0
  %v922 = vadd.f32 %v722, %v921
  %923 = vmatprep.mubr.f32.mxu0 0.0
  %924 = vmatmul.mubr.f32.gmra.mrb[0].mxu0 %v794
  %v925 = vpop.f32.mrb[0].mxu0
  %v926 = vadd.f32 %v727, %v925
  %v927 = vpop.f32.mrb[0].mxu0
  %v928 = vadd.f32 %v727, %v927
  %929 = vmatprep.mubr.f32.mxu0 0.0
  %930 = vmatmul.mubr.f32.gmra.mrb[0].mxu0 %v797
  %v931 = vpop.f32.mrb[0].mxu0
  %v932 = vadd.f32 %v732, %v931
  %v933 = vpop.f32.mrb[0].mxu0
  %v934 = vadd.f32 %v732, %v933
  %935 = vmatprep.mubr.f32.mxu0 0.0
  %936 = vmatmul.mubr.f32.gmra.mrb[0].mxu0 %v800
  %v937 = vpop.f32.mrb[0].mxu0
  %v938 = vadd.f32 %v737, %v937
  %v939 = vpop.f32.mrb[0].mxu0
  %v940 = vadd.f32 %v737, %v939
  %941 = vmatprep.mubr.f32.mxu0 0.0
  %942 = vmatmul.mubr.f32.gmra.mrb[0].mxu0 %v803
  %v943 = vpop.f32.mrb[0].mxu0
  %v944 = vadd.f32 %v742, %v943
  %v945 = vpop.f32.mrb[0].mxu0
  %v946 = vadd.f32 %v742, %v945
  %947 = vmatprep.mubr.f32.mxu0 0.0
  %948 = vmatmul.mubr.f32.gmra.mrb[0].mxu0 %v806
  %v949 = vpop.f32.mrb[0].mxu0
  %v950 = vadd.f32 %v747, %v949
  %v951 = vpop.f32.mrb[0].mxu0
  %v952 = vadd.f32 %v747, %v951
  %953 = vmatprep.mubr.f32.mxu0 0.0
  %954 = vmatmul.mubr.f32.gmra.mrb[0].mxu0 %v809
  %v955 = vpop.f32.mrb[0].mxu0
  %v956 = vadd.f32 %v752, %v955
  %v957 = vpop.f32.mrb[0].mxu0
  %v958 = vadd.f32 %v752, %v957
  %959 = vmatprep.mubr.f32.mxu0 0.0
  %960 = vmatmul.mubr.f32.gmra.mrb[0].mxu0 %v812
  %v961 = vpop.f32.mrb[0].mxu0
  %v962 = vadd.f32 %v757, %v961
  %v963 = vpop.f32.mrb[0].mxu0
  %v964 = vadd.f32 %v757, %v963
  %965 = vmatprep.mubr.f32.mxu0 0.0
  %966 = vmatmul.mubr.f32.gmra.mrb[0].mxu0 %v815
  %v967 = vpop.f32.mrb[0].mxu0
  %v968 = vadd.f32 %v762, %v967
  %v969 = vpop.f32.mrb[0].mxu0
  %v970 = vadd.f32 %v762, %v969
  %971 = vmatprep.mubr.f32.mxu0 0.0
  %972 = vmatmul.mubr.f32.gmra.mrb[0].mxu0 %v818
  %v973 = vpop.f32.mrb[0].mxu0
  %v974 = vadd.f32 %v767, %v973
  %v975 = vpop.f32.mrb[0].mxu0
  %v976 = vadd.f32 %v767, %v975
  %977 = vmatprep.mubr.f32.mxu0 0.0
  %978 = vmatmul.mubr.f32.gmra.mrb[0].mxu0 %v821
  %v979 = vpop.f32.mrb[0].mxu0
  %v980 = vadd.f32 %v772, %v979
  %v981 = vpop.f32.mrb[0].mxu0
  %v982 = vadd.f32 %v772, %v981
  %983 = vdwg.mxu0
  %984 = vmatprep.subr.mxu0 %v633
  %985 = vmatpush1.msra.mxu0 %v632
  %986 = vmatprep.subr.mxu0 %v637
  %987 = vmatpush1.msra.mxu0 %v636
  %988 = vmatprep.subr.mxu0 %v641
  %989 = vmatpush1.msra.mxu0 %v640
  %990 = vmatprep.subr.mxu0 %v645
  %991 = vmatpush1.msra.mxu0 %v644
  %992 = vmatprep.subr.mxu0 %v649
  %993 = vmatpush1.msra.mxu0 %v648
  %994 = vmatprep.subr.mxu0 %v653
  %995 = vmatpush1.msra.mxu0 %v652
  %996 = vmatprep.subr.mxu0 %v657
  %997 = vmatpush1.msra.mxu0 %v656
  %998 = vmatprep.subr.mxu0 %v661
  %999 = vmatpush1.msra.mxu0 %v660
  %1000 = vmatprep.subr.mxu0 0.0
  %1001 = vmatpush1.msra.mxu0 0.0
  %1002 = vmatprep.subr.mxu0 0.0
  %1003 = vmatpush1.msra.mxu0 0.0
  %1004 = vmatprep.subr.mxu0 0.0
  %1005 = vmatpush1.msra.mxu0 0.0
  %1006 = vmatprep.subr.mxu0 0.0
  %1007 = vmatpush1.msra.mxu0 0.0
  %1008 = vmatprep.subr.mxu0 0.0
  %1009 = vmatpush1.msra.mxu0 0.0
  %1010 = vmatprep.subr.mxu0 0.0
  %1011 = vmatpush1.msra.mxu0 0.0
  %1012 = vmatprep.subr.mxu0 0.0
  %1013 = vmatpush1.msra.mxu0 0.0
  %1014 = vmatprep.subr.mxu0 0.0
  %1015 = vmatpush1.msra.mxu0 0.0
  %1016 = vmatprep.subr.mxu0 0.0
  %1017 = vmatpush1.msra.mxu0 0.0
  %1018 = vmatprep.subr.mxu0 0.0
  %1019 = vmatpush1.msra.mxu0 0.0
  %1020 = vmatprep.subr.mxu0 0.0
  %1021 = vmatpush1.msra.mxu0 0.0
  %1022 = vmatprep.subr.mxu0 0.0
  %1023 = vmatpush1.msra.mxu0 0.0
  %1024 = vmatprep.subr.mxu0 0.0
  %1025 = vmatpush1.msra.mxu0 0.0
  %1026 = vmatprep.subr.mxu0 0.0
  %1027 = vmatpush1.msra.mxu0 0.0
  %1028 = vmatprep.subr.mxu0 0.0
  %1029 = vmatpush1.msra.mxu0 0.0
  %1030 = vmatprep.subr.mxu0 0.0
  %1031 = vmatpush1.msra.mxu0 0.0
  %1032 = vmatprep.subr.mxu0 0.0
  %1033 = vmatpush1.msra.mxu0 0.0
  %1034 = vmatprep.subr.mxu0 0.0
  %1035 = vmatpush1.msra.mxu0 0.0
  %1036 = vmatprep.subr.mxu0 0.0
  %1037 = vmatpush1.msra.mxu0 0.0
  %1038 = vmatprep.subr.mxu0 0.0
  %1039 = vmatpush1.msra.mxu0 0.0
  %1040 = vmatprep.subr.mxu0 0.0
  %1041 = vmatpush1.msra.mxu0 0.0
  %1042 = vmatprep.subr.mxu0 0.0
  %1043 = vmatpush1.msra.mxu0 0.0
  %1044 = vmatprep.subr.mxu0 0.0
  %1045 = vmatpush1.msra.mxu0 0.0
  %1046 = vmatprep.subr.mxu0 0.0
  %1047 = vmatpush1.msra.mxu0 0.0
  %1048 = vmatprep.mubr.f32.mxu0 0.0
  %1049 = vmatmul.mubr.f32.gmra.mrb[0].mxu0 %v776
  %v1050 = vpop.f32.mrb[0].mxu0
  %v1051 = vadd.f32 %v697, %v1050
  %v1052 = vpop.f32.mrb[0].mxu0
  %v1053 = vadd.f32 %v697, %v1052
  %1054 = vmatprep.mubr.f32.mxu0 0.0
  %1055 = vmatmul.mubr.f32.gmra.mrb[0].mxu0 %v779
  %v1056 = vpop.f32.mrb[0].mxu0
  %v1057 = vadd.f32 %v702, %v1056
  %v1058 = vpop.f32.mrb[0].mxu0
  %v1059 = vadd.f32 %v702, %v1058
  %1060 = vmatprep.mubr.f32.mxu0 0.0
  %1061 = vmatmul.mubr.f32.gmra.mrb[0].mxu0 %v782
  %v1062 = vpop.f32.mrb[0].mxu0
  %v1063 = vadd.f32 %v707, %v1062
  %v1064 = vpop.f32.mrb[0].mxu0
  %v1065 = vadd.f32 %v707, %v1064
  %1066 = vmatprep.mubr.f32.mxu0 0.0
  %1067 = vmatmul.mubr.f32.gmra.mrb[0].mxu0 %v785
  %v1068 = vpop.f32.mrb[0].mxu0
  %v1069 = vadd.f32 %v712, %v1068
  %v1070 = vpop.f32.mrb[0].mxu0
  %v1071 = vadd.f32 %v712, %v1070
  %1072 = vmatprep.mubr.f32.mxu0 0.0
  %1073 = vmatmul.mubr.f32.gmra.mrb[0].mxu0 %v788
  %v1074 = vpop.f32.mrb[0].mxu0
  %v1075 = vadd.f32 %v717, %v1074
  %v1076 = vpop.f32.mrb[0].mxu0
  %v1077 = vadd.f32 %v717, %v1076
  %1078 = vmatprep.mubr.f32.mxu0 0.0
  %1079 = vmatmul.mubr.f32.gmra.mrb[0].mxu0 %v791
  %v1080 = vpop.f32.mrb[0].mxu0
  %v1081 = vadd.f32 %v722, %v1080
  %v1082 = vpop.f32.mrb[0].mxu0
  %v1083 = vadd.f32 %v722, %v1082
  %1084 = vmatprep.mubr.f32.mxu0 0.0
  %1085 = vmatmul.mubr.f32.gmra.mrb[0].mxu0 %v794
  %v1086 = vpop.f32.mrb[0].mxu0
  %v1087 = vadd.f32 %v727, %v1086
  %v1088 = vpop.f32.mrb[0].mxu0
  %v1089 = vadd.f32 %v727, %v1088
  %1090 = vmatprep.mubr.f32.mxu0 0.0
  %1091 = vmatmul.mubr.f32.gmra.mrb[0].mxu0 %v797
  %v1092 = vpop.f32.mrb[0].mxu0
  %v1093 = vadd.f32 %v732, %v1092
  %v1094 = vpop.f32.mrb[0].mxu0
  %v1095 = vadd.f32 %v732, %v1094
  %1096 = vmatprep.mubr.f32.mxu0 0.0
  %1097 = vmatmul.mubr.f32.gmra.mrb[0].mxu0 %v800
  %v1098 = vpop.f32.mrb[0].mxu0
  %v1099 = vadd.f32 %v737, %v1098
  %v1100 = vpop.f32.mrb[0].mxu0
  %v1101 = vadd.f32 %v737, %v1100
  %1102 = vmatprep.mubr.f32.mxu0 0.0
  %1103 = vmatmul.mubr.f32.gmra.mrb[0].mxu0 %v803
  %v1104 = vpop.f32.mrb[0].mxu0
  %v1105 = vadd.f32 %v742, %v1104
  %v1106 = vpop.f32.mrb[0].mxu0
  %v1107 = vadd.f32 %v742, %v1106
  %1108 = vmatprep.mubr.f32.mxu0 0.0
  %1109 = vmatmul.mubr.f32.gmra.mrb[0].mxu0 %v806
  %v1110 = vpop.f32.mrb[0].mxu0
  %v1111 = vadd.f32 %v747, %v1110
  %v1112 = vpop.f32.mrb[0].mxu0
  %v1113 = vadd.f32 %v747, %v1112
  %1114 = vmatprep.mubr.f32.mxu0 0.0
  %1115 = vmatmul.mubr.f32.gmra.mrb[0].mxu0 %v809
  %v1116 = vpop.f32.mrb[0].mxu0
  %v1117 = vadd.f32 %v752, %v1116
  %v1118 = vpop.f32.mrb[0].mxu0
  %v1119 = vadd.f32 %v752, %v1118
  %1120 = vmatprep.mubr.f32.mxu0 0.0
  %1121 = vmatmul.mubr.f32.gmra.mrb[0].mxu0 %v812
  %v1122 = vpop.f32.mrb[0].mxu0
  %v1123 = vadd.f32 %v757, %v1122
  %v1124 = vpop.f32.mrb[0].mxu0
  %v1125 = vadd.f32 %v757, %v1124
  %1126 = vmatprep.mubr.f32.mxu0 0.0
  %1127 = vmatmul.mubr.f32.gmra.mrb[0].mxu0 %v815
  %v1128 = vpop.f32.mrb[0].mxu0
  %v1129 = vadd.f32 %v762, %v1128
  %v1130 = vpop.f32.mrb[0].mxu0
  %v1131 = vadd.f32 %v762, %v1130
  %1132 = vmatprep.mubr.f32.mxu0 0.0
  %1133 = vmatmul.mubr.f32.gmra.mrb[0].mxu0 %v818
  %v1134 = vpop.f32.mrb[0].mxu0
  %v1135 = vadd.f32 %v767, %v1134
  %v1136 = vpop.f32.mrb[0].mxu0
  %v1137 = vadd.f32 %v767, %v1136
  %1138 = vmatprep.mubr.f32.mxu0 0.0
  %1139 = vmatmul.mubr.f32.gmra.mrb[0].mxu0 %v821
  %v1140 = vpop.f32.mrb[0].mxu0
  %v1141 = vadd.f32 %v772, %v1140
  %v1142 = vpop.f32.mrb[0].mxu0
  %v1143 = vadd.f32 %v772, %v1142
  %1144 = vdwg.mxu0
  %v1145 = vmul.f32 %v890, 0.2
  %v1146 = vmul.f32 %v892, 0.2
  %v1147 = vmul.f32 %v1051, 0.2
  %v1148 = vmul.f32 %v1053, 0.2
  %v1149 = vmul.f32 %v896, 0.2
  %v1150 = vmul.f32 %v898, 0.2
  %v1151 = vmul.f32 %v1057, 0.2
  %v1152 = vmul.f32 %v1059, 0.2
  %v1153 = vmul.f32 %v902, 0.2
  %v1154 = vmul.f32 %v904, 0.2
  %v1155 = vmul.f32 %v1063, 0.2
  %v1156 = vmul.f32 %v1065, 0.2
  %v1157 = vmul.f32 %v908, 0.2
  %v1158 = vmul.f32 %v910, 0.2
  %v1159 = vmul.f32 %v1069, 0.2
  %v1160 = vmul.f32 %v1071, 0.2
  %v1161 = vmul.f32 %v914, 0.2
  %v1162 = vmul.f32 %v916, 0.2
  %v1163 = vmul.f32 %v1075, 0.2
  %v1164 = vmul.f32 %v1077, 0.2
  %v1165 = vmul.f32 %v920, 0.2
  %v1166 = vmul.f32 %v922, 0.2
  %v1167 = vmul.f32 %v1081, 0.2
  %v1168 = vmul.f32 %v1083, 0.2
  %v1169 = vmul.f32 %v926, 0.2
  %v1170 = vmul.f32 %v928, 0.2
  %v1171 = vmul.f32 %v1087, 0.2
  %v1172 = vmul.f32 %v1089, 0.2
  %v1173 = vmul.f32 %v932, 0.2
  %v1174 = vmul.f32 %v934, 0.2
  %v1175 = vmul.f32 %v1093, 0.2
  %v1176 = vmul.f32 %v1095, 0.2
  %v1177 = vmul.f32 %v938, 0.2
  %v1178 = vmul.f32 %v940, 0.2
  %v1179 = vmul.f32 %v1099, 0.2
  %v1180 = vmul.f32 %v1101, 0.2
  %v1181 = vmul.f32 %v944, 0.2
  %v1182 = vmul.f32 %v946, 0.2
  %v1183 = vmul.f32 %v1105, 0.2
  %v1184 = vmul.f32 %v1107, 0.2
  %v1185 = vmul.f32 %v950, 0.2
  %v1186 = vmul.f32 %v952, 0.2
  %v1187 = vmul.f32 %v1111, 0.2
  %v1188 = vmul.f32 %v1113, 0.2
  %v1189 = vmul.f32 %v956, 0.2
  %v1190 = vmul.f32 %v958, 0.2
  %v1191 = vmul.f32 %v1117, 0.2
  %v1192 = vmul.f32 %v1119, 0.2
  %v1193 = vmul.f32 %v962, 0.2
  %v1194 = vmul.f32 %v964, 0.2
  %v1195 = vmul.f32 %v1123, 0.2
  %v1196 = vmul.f32 %v1125, 0.2
  %v1197 = vmul.f32 %v968, 0.2
  %v1198 = vmul.f32 %v970, 0.2
  %v1199 = vmul.f32 %v1129, 0.2
  %v1200 = vmul.f32 %v1131, 0.2
  %v1201 = vmul.f32 %v974, 0.2
  %v1202 = vmul.f32 %v976, 0.2
  %v1203 = vmul.f32 %v1135, 0.2
  %v1204 = vmul.f32 %v1137, 0.2
  %v1205 = vmul.f32 %v980, 0.2
  %v1206 = vmul.f32 %v982, 0.2
  %v1207 = vmul.f32 %v1141, 0.2
  %v1208 = vmul.f32 %v1143, 0.2
  %v1209 = vmax.f32 %v890, %v1145
  %v1210 = vmax.f32 %v892, %v1146
  %v1211 = vmax.f32 %v1051, %v1147
  %v1212 = vmax.f32 %v1053, %v1148
  %v1213 = vmax.f32 %v896, %v1149
  %v1214 = vmax.f32 %v898, %v1150
  %v1215 = vmax.f32 %v1057, %v1151
  %v1216 = vmax.f32 %v1059, %v1152
  %v1217 = vmax.f32 %v902, %v1153
  %v1218 = vmax.f32 %v904, %v1154
  %v1219 = vmax.f32 %v1063, %v1155
  %v1220 = vmax.f32 %v1065, %v1156
  %v1221 = vmax.f32 %v908, %v1157
  %v1222 = vmax.f32 %v910, %v1158
  %v1223 = vmax.f32 %v1069, %v1159
  %v1224 = vmax.f32 %v1071, %v1160
  %v1225 = vmax.f32 %v914, %v1161
  %v1226 = vmax.f32 %v916, %v1162
  %v1227 = vmax.f32 %v1075, %v1163
  %v1228 = vmax.f32 %v1077, %v1164
  %v1229 = vmax.f32 %v920, %v1165
  %v1230 = vmax.f32 %v922, %v1166
  %v1231 = vmax.f32 %v1081, %v1167
  %v1232 = vmax.f32 %v1083, %v1168
  %v1233 = vmax.f32 %v926, %v1169
  %v1234 = vmax.f32 %v928, %v1170
  %v1235 = vmax.f32 %v1087, %v1171
  %v1236 = vmax.f32 %v1089, %v1172
  %v1237 = vmax.f32 %v932, %v1173
  %v1238 = vmax.f32 %v934, %v1174
  %v1239 = vmax.f32 %v1093, %v1175
  %v1240 = vmax.f32 %v1095, %v1176
  %v1241 = vmax.f32 %v938, %v1177
  %v1242 = vmax.f32 %v940, %v1178
  %v1243 = vmax.f32 %v1099, %v1179
  %v1244 = vmax.f32 %v1101, %v1180
  %v1245 = vmax.f32 %v944, %v1181
  %v1246 = vmax.f32 %v946, %v1182
  %v1247 = vmax.f32 %v1105, %v1183
  %v1248 = vmax.f32 %v1107, %v1184
  %v1249 = vmax.f32 %v950, %v1185
  %v1250 = vmax.f32 %v952, %v1186
  %v1251 = vmax.f32 %v1111, %v1187
  %v1252 = vmax.f32 %v1113, %v1188
  %v1253 = vmax.f32 %v956, %v1189
  %v1254 = vmax.f32 %v958, %v1190
  %v1255 = vmax.f32 %v1117, %v1191
  %v1256 = vmax.f32 %v1119, %v1192
  %v1257 = vmax.f32 %v962, %v1193
  %v1258 = vmax.f32 %v964, %v1194
  %v1259 = vmax.f32 %v1123, %v1195
  %v1260 = vmax.f32 %v1125, %v1196
  %v1261 = vmax.f32 %v968, %v1197
  %v1262 = vmax.f32 %v970, %v1198
  %v1263 = vmax.f32 %v1129, %v1199
  %v1264 = vmax.f32 %v1131, %v1200
  %v1265 = vmax.f32 %v974, %v1201
  %v1266 = vmax.f32 %v976, %v1202
  %v1267 = vmax.f32 %v1135, %v1203
  %v1268 = vmax.f32 %v1137, %v1204
  %v1269 = vmax.f32 %v980, %v1205
  %v1270 = vmax.f32 %v982, %v1206
  %v1271 = vmax.f32 %v1141, %v1207
  %v1272 = vmax.f32 %v1143, %v1208
  %v1273 = vld [vmem:[%s7] sm:$0xff]
  %v1274 = vld [vmem:[%s7 + $0x8] sm:$0xff]
  %v1275 = vld [vmem:[%s8] sm:$0xff]
  %v1276 = vld [vmem:[%s8 + $0x8] sm:$0xff]
  %1278 = vset.pattern.permute.xlu0 0
  %1279 = vperm.xlu0 %1278, %v1275
  %v1280 = vpop.permute.xlu0 %1279
  %1283 = vset.pattern.permute.xlu0 0
  %1284 = vperm.xlu0 %1283, %v1276
  %v1285 = vpop.permute.xlu0 %1284
  %1287 = vmatprep.subr.mxu0 %v1210
  %1288 = vmatpush1.msra.mxu0 %v1209
  %1289 = vmatprep.subr.mxu0 %v1214
  %1290 = vmatpush1.msra.mxu0 %v1213
  %1291 = vmatprep.subr.mxu0 %v1218
  %1292 = vmatpush1.msra.mxu0 %v1217
  %1293 = vmatprep.subr.mxu0 %v1222
  %1294 = vmatpush1.msra.mxu0 %v1221
  %1295 = vmatprep.subr.mxu0 %v1226
  %1296 = vmatpush1.msra.mxu0 %v1225
  %1297 = vmatprep.subr.mxu0 %v1230
  %1298 = vmatpush1.msra.mxu0 %v1229
  %1299 = vmatprep.subr.mxu0 %v1234
  %1300 = vmatpush1.msra.mxu0 %v1233
  %1301 = vmatprep.subr.mxu0 %v1238
  %1302 = vmatpush1.msra.mxu0 %v1237
  %1303 = vmatprep.subr.mxu0 %v1242
  %1304 = vmatpush1.msra.mxu0 %v1241
  %1305 = vmatprep.subr.mxu0 %v1246
  %1306 = vmatpush1.msra.mxu0 %v1245
  %1307 = vmatprep.subr.mxu0 %v1250
  %1308 = vmatpush1.msra.mxu0 %v1249
  %1309 = vmatprep.subr.mxu0 %v1254
  %1310 = vmatpush1.msra.mxu0 %v1253
  %1311 = vmatprep.subr.mxu0 %v1258
  %1312 = vmatpush1.msra.mxu0 %v1257
  %1313 = vmatprep.subr.mxu0 %v1262
  %1314 = vmatpush1.msra.mxu0 %v1261
  %1315 = vmatprep.subr.mxu0 %v1266
  %1316 = vmatpush1.msra.mxu0 %v1265
  %1317 = vmatprep.subr.mxu0 %v1270
  %1318 = vmatpush1.msra.mxu0 %v1269
  %1319 = vmatprep.subr.mxu0 0.0
  %1320 = vmatpush1.msra.mxu0 0.0
  %1321 = vmatprep.subr.mxu0 0.0
  %1322 = vmatpush1.msra.mxu0 0.0
  %1323 = vmatprep.subr.mxu0 0.0
  %1324 = vmatpush1.msra.mxu0 0.0
  %1325 = vmatprep.subr.mxu0 0.0
  %1326 = vmatpush1.msra.mxu0 0.0
  %1327 = vmatprep.subr.mxu0 0.0
  %1328 = vmatpush1.msra.mxu0 0.0
  %1329 = vmatprep.subr.mxu0 0.0
  %1330 = vmatpush1.msra.mxu0 0.0
  %1331 = vmatprep.subr.mxu0 0.0
  %1332 = vmatpush1.msra.mxu0 0.0
  %1333 = vmatprep.subr.mxu0 0.0
  %1334 = vmatpush1.msra.mxu0 0.0
  %1335 = vmatprep.subr.mxu0 0.0
  %1336 = vmatpush1.msra.mxu0 0.0
  %1337 = vmatprep.subr.mxu0 0.0
  %1338 = vmatpush1.msra.mxu0 0.0
  %1339 = vmatprep.subr.mxu0 0.0
  %1340 = vmatpush1.msra.mxu0 0.0
  %1341 = vmatprep.subr.mxu0 0.0
  %1342 = vmatpush1.msra.mxu0 0.0
  %1343 = vmatprep.subr.mxu0 0.0
  %1344 = vmatpush1.msra.mxu0 0.0
  %1345 = vmatprep.subr.mxu0 0.0
  %1346 = vmatpush1.msra.mxu0 0.0
  %1347 = vmatprep.subr.mxu0 0.0
  %1348 = vmatpush1.msra.mxu0 0.0
  %1349 = vmatprep.subr.mxu0 0.0
  %1350 = vmatpush1.msra.mxu0 0.0
  %1351 = vmatprep.mubr.f32.mxu0 0.0
  %1352 = vmatmul.mubr.f32.gmra.mrb[0].mxu0 %v1273
  %v1353 = vpop.f32.mrb[0].mxu0
  %v1354 = vadd.f32 %v1280, %v1353
  %v1355 = vpop.f32.mrb[0].mxu0
  %v1356 = vadd.f32 %v1280, %v1355
  %1357 = vmatprep.mubr.f32.mxu0 0.0
  %1358 = vmatmul.mubr.f32.gmra.mrb[0].mxu0 %v1274
  %v1359 = vpop.f32.mrb[0].mxu0
  %v1360 = vadd.f32 %v1285, %v1359
  %v1361 = vpop.f32.mrb[0].mxu0
  %v1362 = vadd.f32 %v1285, %v1361
  %1363 = vdwg.mxu0
  %1364 = vmatprep.subr.mxu0 %v1212
  %1365 = vmatpush1.msra.mxu0 %v1211
  %1366 = vmatprep.subr.mxu0 %v1216
  %1367 = vmatpush1.msra.mxu0 %v1215
  %1368 = vmatprep.subr.mxu0 %v1220
  %1369 = vmatpush1.msra.mxu0 %v1219
  %1370 = vmatprep.subr.mxu0 %v1224
  %1371 = vmatpush1.msra.mxu0 %v1223
  %1372 = vmatprep.subr.mxu0 %v1228
  %1373 = vmatpush1.msra.mxu0 %v1227
  %1374 = vmatprep.subr.mxu0 %v1232
  %1375 = vmatpush1.msra.mxu0 %v1231
  %1376 = vmatprep.subr.mxu0 %v1236
  %1377 = vmatpush1.msra.mxu0 %v1235
  %1378 = vmatprep.subr.mxu0 %v1240
  %1379 = vmatpush1.msra.mxu0 %v1239
  %1380 = vmatprep.subr.mxu0 %v1244
  %1381 = vmatpush1.msra.mxu0 %v1243
  %1382 = vmatprep.subr.mxu0 %v1248
  %1383 = vmatpush1.msra.mxu0 %v1247
  %1384 = vmatprep.subr.mxu0 %v1252
  %1385 = vmatpush1.msra.mxu0 %v1251
  %1386 = vmatprep.subr.mxu0 %v1256
  %1387 = vmatpush1.msra.mxu0 %v1255
  %1388 = vmatprep.subr.mxu0 %v1260
  %1389 = vmatpush1.msra.mxu0 %v1259
  %1390 = vmatprep.subr.mxu0 %v1264
  %1391 = vmatpush1.msra.mxu0 %v1263
  %1392 = vmatprep.subr.mxu0 %v1268
  %1393 = vmatpush1.msra.mxu0 %v1267
  %1394 = vmatprep.subr.mxu0 %v1272
  %1395 = vmatpush1.msra.mxu0 %v1271
  %1396 = vmatprep.subr.mxu0 0.0
  %1397 = vmatpush1.msra.mxu0 0.0
  %1398 = vmatprep.subr.mxu0 0.0
  %1399 = vmatpush1.msra.mxu0 0.0
  %1400 = vmatprep.subr.mxu0 0.0
  %1401 = vmatpush1.msra.mxu0 0.0
  %1402 = vmatprep.subr.mxu0 0.0
  %1403 = vmatpush1.msra.mxu0 0.0
  %1404 = vmatprep.subr.mxu0 0.0
  %1405 = vmatpush1.msra.mxu0 0.0
  %1406 = vmatprep.subr.mxu0 0.0
  %1407 = vmatpush1.msra.mxu0 0.0
  %1408 = vmatprep.subr.mxu0 0.0
  %1409 = vmatpush1.msra.mxu0 0.0
  %1410 = vmatprep.subr.mxu0 0.0
  %1411 = vmatpush1.msra.mxu0 0.0
  %1412 = vmatprep.subr.mxu0 0.0
  %1413 = vmatpush1.msra.mxu0 0.0
  %1414 = vmatprep.subr.mxu0 0.0
  %1415 = vmatpush1.msra.mxu0 0.0
  %1416 = vmatprep.subr.mxu0 0.0
  %1417 = vmatpush1.msra.mxu0 0.0
  %1418 = vmatprep.subr.mxu0 0.0
  %1419 = vmatpush1.msra.mxu0 0.0
  %1420 = vmatprep.subr.mxu0 0.0
  %1421 = vmatpush1.msra.mxu0 0.0
  %1422 = vmatprep.subr.mxu0 0.0
  %1423 = vmatpush1.msra.mxu0 0.0
  %1424 = vmatprep.subr.mxu0 0.0
  %1425 = vmatpush1.msra.mxu0 0.0
  %1426 = vmatprep.subr.mxu0 0.0
  %1427 = vmatpush1.msra.mxu0 0.0
  %1428 = vmatprep.mubr.f32.mxu0 0.0
  %1429 = vmatmul.mubr.f32.gmra.mrb[0].mxu0 %v1273
  %v1430 = vpop.f32.mrb[0].mxu0
  %v1431 = vadd.f32 %v1280, %v1430
  %v1432 = vpop.f32.mrb[0].mxu0
  %v1433 = vadd.f32 %v1280, %v1432
  %1434 = vmatprep.mubr.f32.mxu0 0.0
  %1435 = vmatmul.mubr.f32.gmra.mrb[0].mxu0 %v1274
  %v1436 = vpop.f32.mrb[0].mxu0
  %v1437 = vadd.f32 %v1285, %v1436
  %v1438 = vpop.f32.mrb[0].mxu0
  %v1439 = vadd.f32 %v1285, %v1438
  %1440 = vdwg.mxu0
  %v1441 = vtanh.pop %v1354
  %v1442 = vtanh.pop %v1356
  %v1443 = vtanh.pop %v1431
  %v1444 = vtanh.pop %v1433
  %v1445 = vtanh.pop %v1360
  %v1446 = vtanh.pop %v1362
  %v1447 = vtanh.pop %v1437
  %v1448 = vtanh.pop %v1439
  %1449 = vst [vmem:[%s9] sm:$0xff] %v1441
  %1450 = vst [vmem:[%s9 + $0x8] sm:$0xff] %v1442
  %1451 = vst [vmem:[%s9 + $0x10] sm:$0xff] %v1443
  %1452 = vst [vmem:[%s9 + $0x18] sm:$0xff] %v1444
  %1453 = vst [vmem:[%s9 + $0x20] sm:$0xff] %v1445
  %1454 = vst [vmem:[%s9 + $0x28] sm:$0xff] %v1446
  %1455 = vst [vmem:[%s9 + $0x30] sm:$0xff] %v1447
  %1456 = vst [vmem:[%s9 + $0x38] sm:$0xff] %v1448
  // Predicated region
  $region38: #{generator_forward.1} parent=0 // pred_check
    _
  $region39: #{generator_forward.1} parent=0 // pred_check_branch
    %1458 = sbr.rel (0) target = $region41
  $region40: #{generator_forward.1} parent=0 // pred_region
    _
  $region41: #{generator_forward.1} parent=0 // pred_fallthru
    _
  // Predicated region
  $region42: #{generator_forward.1} parent=0 // pred_check
    _
  $region43: #{generator_forward.1} parent=0 // pred_check_branch
    %1460 = sbr.rel (0) target = $region45
  $region44: #{generator_forward.1} parent=0 // pred_region
    _
  $region45: #{generator_forward.1} parent=0 // pred_fallthru
    _

</llo_original>
